<compile_context>
chip_gen: v5e
topology: v5e:2x2
jax: 0.10.0
libtpu: 0.0.40
codegen_flags: <defaults>
</compile_context>

<pallas_src>
import math
import jax
import jax.numpy as jnp
from jax.experimental import pallas as pl
from jax.experimental.pallas import tpu as pltpu


def _round_up(a, m):
    return (a + m - 1) // m * m


# ---------------------------------------------------------------------------
# Path A: lane-dense flat layout + MXU segmented reduction (small per-sample W)
# ---------------------------------------------------------------------------
def _tensor_linear_flat_kernel(s_ref, r_ref, w_ref, x_ref, b_ref, o_ref):
    """TB independent matvecs, flat lane-dense layout.

    s_ref: (in_f, out_f*in_f)   one-hot "spread" matrix  S[i, o*in_f+i] = 1
    r_ref: (out_f*in_f, out_f)  one-hot "reduce" matrix  R[o*in_f+i, o] = 1
    w_ref: (TB, out_f*in_f)     flattened per-sample weights (row-major o, i)
    x_ref: (TB, in_f)
    b_ref: (TB, out_f)
    o_ref: (TB, out_f)
    """
    x = x_ref[...].astype(jnp.float32)                           # (TB, in)
    # Spread x across the out groups in lane space: xs[t, o*in+i] = x[t, i].
    # Done on the MXU (exact with HIGHEST precision); avoids an in-kernel
    # reshape/relayout and keeps the VPU/XLU free.
    xs = jax.lax.dot_general(
        x, s_ref[...], (((1,), (0,)), ((), ())),
        precision=jax.lax.Precision.HIGHEST,
        preferred_element_type=jnp.float32)                      # (TB, out*in)
    p = w_ref[...].astype(jnp.float32) * xs                      # (TB, out*in)
    # Segmented sum over each group of in_f lanes -> (TB, out), again on MXU.
    y = jax.lax.dot_general(
        p, r_ref[...], (((1,), (0,)), ((), ())),
        precision=jax.lax.Precision.HIGHEST,
        preferred_element_type=jnp.float32)                      # (TB, out)
    o_ref[...] = (y + b_ref[...].astype(jnp.float32)).astype(o_ref.dtype)


# ---------------------------------------------------------------------------
# Path B: broadcast-multiply + lane reduction (fallback for large per-sample W)
# ---------------------------------------------------------------------------
def _tensor_linear_bcast_kernel(w_ref, x_ref, b_ref, o_ref):
    """w_ref: (TB, out, in)  x_ref: (TB, in)  b_ref/o_ref: (TB, out)."""
    w = w_ref[...].astype(jnp.float32)            # (TB, out, in)
    x = x_ref[...].astype(jnp.float32)            # (TB, in)
    y = jnp.sum(w * x[:, None, :], axis=-1)       # (TB, out), f32 accumulation
    o_ref[...] = (y + b_ref[...].astype(jnp.float32)).astype(o_ref.dtype)


def tensor_linear(weight, bias, x, *, tb=None, force_pallas=False, use_flat=None):
    """weight: (*bd, out, in), bias: (*bd, out), x: (*bd, in) -> (*bd, out)."""
    *bd, out_f, in_f = weight.shape
    bd = tuple(bd)
    assert x.shape == bd + (in_f,)
    assert bias.shape == bd + (out_f,)

    B = 1
    for d in bd:
        B *= d

    itemsize = jnp.dtype(x.dtype).itemsize
    stream_bytes = (out_f * in_f + in_f + 2 * out_f) * itemsize
    total_bytes = B * stream_bytes

    # Tiny problems: pallas_call launch + pipeline prologue dominates; let XLA
    # fuse a plain einsum instead.
    if not force_pallas and total_bytes < (256 << 10):
        return jnp.einsum("...oi,...i->...o", weight, x) + bias

    # One-hot spread/reduce constant sizes (f32); only use the flat/MXU path
    # when they stay comfortably VMEM-resident.
    const_bytes = (in_f * out_f * in_f + out_f * in_f * out_f) * 4
    if use_flat is None:
        use_flat = const_bytes <= (4 << 20)

    budget = 16 * 1024 * 1024  # conservative: fine for v7x (64 MiB) and v5e/v6e
    if use_flat:
        # Double-buffered streams + two f32 (TB, out*in) intermediates.
        per_sample = 2 * stream_bytes + 2 * out_f * in_f * 4
        budget = max(budget - 2 * const_bytes, 4 << 20)
    else:
        # Double-buffered streams + the f32 broadcast-multiply intermediate.
        per_sample = 2 * stream_bytes + out_f * in_f * 4

    if tb is None:
        tb = budget // max(per_sample, 1)
        tb = max(8, min(2048, (tb // 8) * 8))
    tb = max(8, (tb // 8) * 8)
    tb = min(tb, _round_up(B, 8))   # never larger than the padded batch

    B_pad = _round_up(B, tb)
    pad = B_pad - B

    x2 = x.reshape(B, in_f)
    b2 = bias.reshape(B, out_f)
    if pad:
        x2 = jnp.pad(x2, ((0, pad), (0, 0)))
        b2 = jnp.pad(b2, ((0, pad), (0, 0)))

    grid = (B_pad // tb,)
    vmem_step = tb * per_sample + (2 * const_bytes if use_flat else 0)
    vmem_limit = int(min(max(vmem_step + (8 << 20), 32 << 20), 48 << 20))

    compiler_params = pltpu.CompilerParams(
        dimension_semantics=("parallel",),
        vmem_limit_bytes=vmem_limit,
    )
    cost = pl.CostEstimate(
        flops=2 * B * out_f * in_f,
        transcendentals=0,
        bytes_accessed=total_bytes,
    )
    out_shape = jax.ShapeDtypeStruct((B_pad, out_f), x.dtype)

    # TODO(synk): for very large out_f*in_f add a K-reduction grid axis over
    # tiles of in_f with an f32 VMEM accumulator (pl.when init/finalize) so the
    # per-step weight tile stays within VMEM without shrinking TB to 8.

    if use_flat:
        oi = out_f * in_f
        w2 = weight.reshape(B, oi)           # free: contiguous row-major reshape
        if pad:
            w2 = jnp.pad(w2, ((0, pad), (0, 0)))
        k_idx = jnp.arange(oi, dtype=jnp.int32)
        spread = (k_idx[None, :] % in_f
                  == jnp.arange(in_f, dtype=jnp.int32)[:, None]).astype(jnp.float32)
        reduce = (k_idx[:, None] // in_f
                  == jnp.arange(out_f, dtype=jnp.int32)[None, :]).astype(jnp.float32)

        out = pl.pallas_call(
            _tensor_linear_flat_kernel,
            out_shape=out_shape,
            grid_spec=pltpu.PrefetchScalarGridSpec(
                num_scalar_prefetch=0,
                grid=grid,
                in_specs=[
                    pl.BlockSpec((in_f, oi), lambda b: (0, 0)),    # S (resident)
                    pl.BlockSpec((oi, out_f), lambda b: (0, 0)),   # R (resident)
                    pl.BlockSpec((tb, oi), lambda b: (b, 0)),      # weights
                    pl.BlockSpec((tb, in_f), lambda b: (b, 0)),    # x
                    pl.BlockSpec((tb, out_f), lambda b: (b, 0)),   # bias
                ],
                out_specs=pl.BlockSpec((tb, out_f), lambda b: (b, 0)),
            ),
            compiler_params=compiler_params,
            cost_estimate=cost,
        )(spread, reduce, w2, x2, b2)
    else:
        w3 = weight.reshape(B, out_f, in_f)
        if pad:
            w3 = jnp.pad(w3, ((0, pad), (0, 0), (0, 0)))

        out = pl.pallas_call(
            _tensor_linear_bcast_kernel,
            out_shape=out_shape,
            grid_spec=pltpu.PrefetchScalarGridSpec(
                num_scalar_prefetch=0,
                grid=grid,
                in_specs=[
                    pl.BlockSpec((tb, out_f, in_f), lambda b: (b, 0, 0)),
                    pl.BlockSpec((tb, in_f), lambda b: (b, 0)),
                    pl.BlockSpec((tb, out_f), lambda b: (b, 0)),
                ],
                out_specs=pl.BlockSpec((tb, out_f), lambda b: (b, 0)),
            ),
            compiler_params=compiler_params,
            cost_estimate=cost,
        )(w3, x2, b2)

    return out[:B].reshape(bd + (out_f,))


def init_tensor_linear_params(key, *shape, dtype=jnp.float32):
    """Deterministic re-implementation of TensorLinear.reset_parameters()."""
    in_features = shape[-2]
    out_features = shape[-1]
    batch_dims = shape[:-2]
    w_shape = batch_dims + (out_features, in_features)
    b_shape = batch_dims + (out_features,)

    # torch._calculate_fan_in_and_fan_out on a tensor with >2 dims:
    #   fan_in = size(1) * prod(size(2:))
    receptive = 1
    for d in w_shape[2:]:
        receptive *= d
    fan_in = w_shape[1] * receptive if len(w_shape) > 1 else w_shape[0]

    # kaiming_uniform_(a=sqrt(5)) -> bound = sqrt(6/((1+a^2)*fan_in)) = 1/sqrt(fan_in)
    w_bound = 1.0 / math.sqrt(fan_in)
    b_bound = 1.0 / math.sqrt(fan_in)

    kw, kb = jax.random.split(key)
    weight = jax.random.uniform(kw, w_shape, dtype=dtype, minval=-w_bound, maxval=w_bound)
    bias = jax.random.uniform(kb, b_shape, dtype=dtype, minval=-b_bound, maxval=b_bound)
    return weight, bias


if __name__ == "__main__":
    key = jax.random.PRNGKey(0)
    k_param, k_x, k_param2, k_x2, k_param3, k_x3 = jax.random.split(key, 6)

    # TensorLinear(4, 32, 16): batch_dims=(4,), in_features=32, out_features=16
    batch_dims = (4,)
    in_features = 32
    out_features = 16

    weight, bias = init_tensor_linear_params(
        k_param, *batch_dims, in_features, out_features)
    x = jax.random.normal(k_x, batch_dims + (in_features,), dtype=jnp.float32)

    y = tensor_linear(weight, bias, x, force_pallas=True)
    y = jax.block_until_ready(y)

    # Pure-JAX reference: rmv(W, x) + bias == einsum('...oi,...i->...o')
    y_ref = jnp.einsum("...oi,...i->...o", weight, x) + bias
    assert y.shape == batch_dims + (out_features,)
    assert jnp.allclose(y, y_ref, atol=1e-5, rtol=1e-5), "mismatch vs reference"

    # Second check: multi-step grid + batch padding (B=20 -> padded 24, TB=8).
    batch_dims2 = (5, 4)
    weight2, bias2 = init_tensor_linear_params(
        k_param2, *batch_dims2, in_features, out_features)
    x2 = jax.random.normal(k_x2, batch_dims2 + (in_features,), dtype=jnp.float32)

    y2 = tensor_linear(weight2, bias2, x2, tb=8, force_pallas=True)
    y2 = jax.block_until_ready(y2)
    y2_ref = jnp.einsum("...oi,...i->...o", weight2, x2) + bias2
    assert y2.shape == batch_dims2 + (out_features,)
    assert jnp.allclose(y2, y2_ref, atol=1e-5, rtol=1e-5), "mismatch vs reference (padded)"

    # Third check: exercise the fallback (broadcast + lane-reduce) path.
    batch_dims3 = (6,)
    weight3, bias3 = init_tensor_linear_params(
        k_param3, *batch_dims3, in_features, out_features)
    x3 = jax.random.normal(k_x3, batch_dims3 + (in_features,), dtype=jnp.float32)

    y3 = tensor_linear(weight3, bias3, x3, force_pallas=True, use_flat=False)
    y3 = jax.block_until_ready(y3)
    y3_ref = jnp.einsum("...oi,...i->...o", weight3, x3) + bias3
    assert y3.shape == batch_dims3 + (out_features,)
    assert jnp.allclose(y3, y3_ref, atol=1e-5, rtol=1e-5), "mismatch vs reference (bcast path)"

    print("KERNEL_OK")
</pallas_src>

<mosaic_0001>
module attributes {stable_mosaic.version = 11 : i64} {
  func.func @_tensor_linear_flat_kernel(%arg0: i32, %arg1: memref<32x512xf32, #tpu.memory_space<vmem>>, %arg2: memref<512x16xf32, #tpu.memory_space<vmem>>, %arg3: memref<8x512xf32, #tpu.memory_space<vmem>>, %arg4: memref<8x32xf32, #tpu.memory_space<vmem>>, %arg5: memref<8x16xf32, #tpu.memory_space<vmem>>, %arg6: memref<8x16xf32, #tpu.memory_space<vmem>>) attributes {dimension_semantics = [#tpu.dimension_semantics<parallel>], iteration_bounds = array<i64: 1>, scalar_prefetch = 0 : i64, scratch_operands = 0 : i64, tpu.core_type = #tpu.core_type<tc>, window_params = [{pipeline_mode = #tpu.pipeline_mode<synchronous>, transform_indices = @transform_0, window_bounds = array<i64: 32, 512>}, {pipeline_mode = #tpu.pipeline_mode<synchronous>, transform_indices = @transform_1, window_bounds = array<i64: 512, 16>}, {transform_indices = @transform_2, window_bounds = array<i64: 8, 512>}, {transform_indices = @transform_3, window_bounds = array<i64: 8, 32>}, {transform_indices = @transform_4, window_bounds = array<i64: 8, 16>}, {transform_indices = @transform_5, window_bounds = array<i64: 8, 16>}]} {
    %c0 = arith.constant 0 : index
    %c0_0 = arith.constant 0 : index
    %0 = vector.load %arg4[%c0, %c0_0] : memref<8x32xf32, #tpu.memory_space<vmem>>, vector<8x32xf32>
    %c0_1 = arith.constant 0 : index
    %c0_2 = arith.constant 0 : index
    %1 = vector.load %arg1[%c0_1, %c0_2] : memref<32x512xf32, #tpu.memory_space<vmem>>, vector<32x512xf32>
    %cst = arith.constant dense<0.000000e+00> : vector<8x512xf32>
    %2 = tpu.matmul %0, %1, %cst {dimension_numbers = #tpu.dot_dimension_numbers<[1], [0], [0], [1], [0, 0, 1, 1], [], []>, precision = #tpu.contract_precision<fp32>} : vector<8x32xf32>, vector<32x512xf32>, vector<8x512xf32> -> vector<8x512xf32>
    %c0_3 = arith.constant 0 : index
    %c0_4 = arith.constant 0 : index
    %3 = vector.load %arg3[%c0_3, %c0_4] : memref<8x512xf32, #tpu.memory_space<vmem>>, vector<8x512xf32>
    %4 = arith.mulf %3, %2 : vector<8x512xf32>
    %c0_5 = arith.constant 0 : index
    %c0_6 = arith.constant 0 : index
    %5 = vector.load %arg2[%c0_5, %c0_6] : memref<512x16xf32, #tpu.memory_space<vmem>>, vector<512x16xf32>
    %cst_7 = arith.constant dense<0.000000e+00> : vector<8x16xf32>
    %6 = tpu.matmul %4, %5, %cst_7 {dimension_numbers = #tpu.dot_dimension_numbers<[1], [0], [0], [1], [0, 0, 1, 1], [], []>, precision = #tpu.contract_precision<fp32>} : vector<8x512xf32>, vector<512x16xf32>, vector<8x16xf32> -> vector<8x16xf32>
    %c0_8 = arith.constant 0 : index
    %c0_9 = arith.constant 0 : index
    %7 = vector.load %arg5[%c0_8, %c0_9] : memref<8x16xf32, #tpu.memory_space<vmem>>, vector<8x16xf32>
    %8 = arith.addf %6, %7 : vector<8x16xf32>
    %c0_10 = arith.constant 0 : index
    %c0_11 = arith.constant 0 : index
    %9 = vector.load %arg6[%c0_10, %c0_11] : memref<8x16xf32, #tpu.memory_space<vmem>>, vector<8x16xf32>
    tpu.vector_store %arg6[%c0_10, %c0_11], %8 {strides = array<i32>} : memref<8x16xf32, #tpu.memory_space<vmem>>, vector<8x16xf32>,
    return
  }
  func.func @transform_0(%arg0: i32) -> (i32, i32) {
    %c0_i32 = arith.constant 0 : i32
    %c0_i32_0 = arith.constant 0 : i32
    %c0_i32_1 = arith.constant 0 : i32
    return %c0_i32, %c0_i32_0 : i32, i32
  }
  func.func @transform_1(%arg0: i32) -> (i32, i32) {
    %c0_i32 = arith.constant 0 : i32
    %c0_i32_0 = arith.constant 0 : i32
    %c0_i32_1 = arith.constant 0 : i32
    return %c0_i32, %c0_i32_0 : i32, i32
  }
  func.func @transform_2(%arg0: i32) -> (i32, i32) {
    %c0_i32 = arith.constant 0 : i32
    %c0_i32_0 = arith.constant 0 : i32
    return %arg0, %c0_i32 : i32, i32
  }
  func.func @transform_3(%arg0: i32) -> (i32, i32) {
    %c0_i32 = arith.constant 0 : i32
    %c0_i32_0 = arith.constant 0 : i32
    return %arg0, %c0_i32 : i32, i32
  }
  func.func @transform_4(%arg0: i32) -> (i32, i32) {
    %c0_i32 = arith.constant 0 : i32
    %c0_i32_0 = arith.constant 0 : i32
    return %arg0, %c0_i32 : i32, i32
  }
  func.func @transform_5(%arg0: i32) -> (i32, i32) {
    %c0_i32 = arith.constant 0 : i32
    %c0_i32_0 = arith.constant 0 : i32
    return %arg0, %c0_i32 : i32, i32
  }
}

</mosaic_0001>

<llo_original>
// kernel: tpu_custom_call.1
$region0: #{tpu_custom_call.1}
  #allocation0 [shape = 'u32[]', space=smem, size = 0x4, offset = 0x4, fixed_abs, tag = 'smem constant byte address 0x4 - core index']
  #allocation1 [shape = 'u32[72,128]{1,0:T(1,128)}', space=vmem, size = 0x9000, scoped, tag = 'internal scratch']
  %s0 = inlined_call_operand.vmem [shape: f32[32,512], index: 0, kind: input, shape index: {}]
  %s1 = inlined_call_operand.vmem [shape: f32[512,16], index: 1, kind: input, shape index: {}]
  %s2 = inlined_call_operand.vmem [shape: f32[8,512], index: 2, kind: input, shape index: {}]
  %s3 = inlined_call_operand.vmem [shape: f32[8,32], index: 3, kind: input, shape index: {}]
  %s4 = inlined_call_operand.vmem [shape: f32[8,16], index: 4, kind: input, shape index: {}]
  %s5 = inlined_call_operand.hbm [shape: f32[8,16], index: 5, kind: output, shape index: {}]
  %s6 = sld [smem:[#allocation0]]
  $region30: #{tpu_custom_call.1} parent=0
    _
  %s8 = ssub.s32 1, %s6
  %s9 = scalar_select 0, %s8, %s6
  $region1: #{tpu_custom_call.1} parent=0
    #allocation2 [shape = 'u8[4096]{0}', space=vmem, size = 0x1000, scoped, tag = 'output window, operand 0, single buffered']
    #allocation3 [shape = 's32[1]{0}', space=sflag, size = 0x4, scoped, tag = 'scoped memory for tpu_custom_call.1']
    %10 = vsyncpa [#allocation3], 0
    // Predicated region
    $region2: #{tpu_custom_call.1} parent=1 // pred_check
      _
    $region3: #{tpu_custom_call.1} parent=1 // pred_check_branch
      %12 = sbr.rel (0) target = $region5
    $region4: #{tpu_custom_call.1} parent=1 // pred_region
      _
    $region5: #{tpu_custom_call.1} parent=1 // pred_fallthru
      _
    // Predicated region
    $region6: #{tpu_custom_call.1} parent=1 // pred_check
      _
    $region7: #{tpu_custom_call.1} parent=1 // pred_check_branch
      %14 = sbr.rel (0) target = $region9
    $region8: #{tpu_custom_call.1} parent=1 // pred_region
      _
    $region9: #{tpu_custom_call.1} parent=1 // pred_fallthru
      _
    // Predicated region
    $region10: #{tpu_custom_call.1} parent=1 // pred_check
      _
    $region11: #{tpu_custom_call.1} parent=1 // pred_check_branch
      %16 = sbr.rel (0) target = $region13
    $region12: #{tpu_custom_call.1} parent=1 // pred_region
      _
    $region13: #{tpu_custom_call.1} parent=1 // pred_fallthru
      _
    // Predicated region
    $region14: #{tpu_custom_call.1} parent=1 // pred_check
      _
    $region15: #{tpu_custom_call.1} parent=1 // pred_check_branch
      %18 = sbr.rel (0) target = $region17
    $region16: #{tpu_custom_call.1} parent=1 // pred_region
      _
    $region17: #{tpu_custom_call.1} parent=1 // pred_fallthru
      _
    // Predicated region
    $region18: #{tpu_custom_call.1} parent=1 // pred_check
      _
    $region19: #{tpu_custom_call.1} parent=1 // pred_check_branch
      %20 = sbr.rel (0) target = $region21
    $region20: #{tpu_custom_call.1} parent=1 // pred_region
      _
    $region21: #{tpu_custom_call.1} parent=1 // pred_fallthru
      _
    %v21 = vld [vmem:[%s3] sm:$0xff]
    %v22 = vld [vmem:[%s0] sm:$0xff]
    %v23 = vld [vmem:[%s0 + $0x8] sm:$0xff]
    %v24 = vld [vmem:[%s0 + $0x10] sm:$0xff]
    %v25 = vld [vmem:[%s0 + $0x18] sm:$0xff]
    %v26 = vld [vmem:[%s0 + $0x20] sm:$0xff]
    %v27 = vld [vmem:[%s0 + $0x28] sm:$0xff]
    %v28 = vld [vmem:[%s0 + $0x30] sm:$0xff]
    %v29 = vld [vmem:[%s0 + $0x38] sm:$0xff]
    %v30 = vld [vmem:[%s0 + $0x40] sm:$0xff]
    %v31 = vld [vmem:[%s0 + $0x48] sm:$0xff]
    %v32 = vld [vmem:[%s0 + $0x50] sm:$0xff]
    %v33 = vld [vmem:[%s0 + $0x58] sm:$0xff]
    %v34 = vld [vmem:[%s0 + $0x60] sm:$0xff]
    %v35 = vld [vmem:[%s0 + $0x68] sm:$0xff]
    %v36 = vld [vmem:[%s0 + $0x70] sm:$0xff]
    %v37 = vld [vmem:[%s0 + $0x78] sm:$0xff]
    %vm38 = vcmask 261120
    %v40 = vsel %vm38, %v21, 0
    %42 = vmatpush.msra.mxu0 0.0
    %43 = vmatpush.msra.mxu0 0.0
    %44 = vmatpush.msra.mxu0 0.0
    %45 = vmatpush.msra.mxu0 0.0
    %46 = vmatpush.msra.mxu0 0.0
    %47 = vmatpush.msra.mxu0 0.0
    %48 = vmatpush.msra.mxu0 0.0
    %49 = vmatpush.msra.mxu0 0.0
    %50 = vmatpush.msra.mxu0 0.0
    %51 = vmatpush.msra.mxu0 0.0
    %52 = vmatpush.msra.mxu0 0.0
    %53 = vmatpush.msra.mxu0 0.0
    %v54 = vand.u32 %v34, 4294901760
    %55 = vmatpush.msra.mxu0 %v54
    %v56 = vand.u32 %v30, 4294901760
    %57 = vmatpush.msra.mxu0 %v56
    %v58 = vand.u32 %v26, 4294901760
    %59 = vmatpush.msra.mxu0 %v58
    %v60 = vand.u32 %v22, 4294901760
    %61 = vmatpush.msra.mxu0 %v60
    %v62 = vand.u32 %v40, 4294901760
    %v63 = vsub.f32 %v40, %v62
    %v64 = vand.u32 %v63, 4294901760
    %v65 = vsub.f32 %v63, %v64
    %v66 = vand.u32 %v65, 4294901760
    %67 = vmatmul.f32.gmra.mxu0 %v66
    %v68 = vpop.f32.mrf.mxu0
    %v69 = vadd.f32 0.0, %v68
    %70 = vdwg.mxu0
    %71 = vmatpush.msra.mxu0 0.0
    %72 = vmatpush.msra.mxu0 0.0
    %73 = vmatpush.msra.mxu0 0.0
    %74 = vmatpush.msra.mxu0 0.0
    %75 = vmatpush.msra.mxu0 0.0
    %76 = vmatpush.msra.mxu0 0.0
    %77 = vmatpush.msra.mxu0 0.0
    %78 = vmatpush.msra.mxu0 0.0
    %79 = vmatpush.msra.mxu0 0.0
    %80 = vmatpush.msra.mxu0 0.0
    %81 = vmatpush.msra.mxu0 0.0
    %82 = vmatpush.msra.mxu0 0.0
    %v83 = vand.u32 %v34, 4294901760
    %v84 = vsub.f32 %v34, %v83
    %v85 = vand.u32 %v84, 4294901760
    %v86 = vsub.f32 %v84, %v85
    %v87 = vand.u32 %v86, 4294901760
    %88 = vmatpush.msra.mxu0 %v87
    %v89 = vand.u32 %v30, 4294901760
    %v90 = vsub.f32 %v30, %v89
    %v91 = vand.u32 %v90, 4294901760
    %v92 = vsub.f32 %v90, %v91
    %v93 = vand.u32 %v92, 4294901760
    %94 = vmatpush.msra.mxu0 %v93
    %v95 = vand.u32 %v26, 4294901760
    %v96 = vsub.f32 %v26, %v95
    %v97 = vand.u32 %v96, 4294901760
    %v98 = vsub.f32 %v96, %v97
    %v99 = vand.u32 %v98, 4294901760
    %100 = vmatpush.msra.mxu0 %v99
    %v101 = vand.u32 %v22, 4294901760
    %v102 = vsub.f32 %v22, %v101
    %v103 = vand.u32 %v102, 4294901760
    %v104 = vsub.f32 %v102, %v103
    %v105 = vand.u32 %v104, 4294901760
    %106 = vmatpush.msra.mxu0 %v105
    %v107 = vand.u32 %v40, 4294901760
    %108 = vmatmul.f32.gmra.mxu0 %v107
    %v109 = vpop.f32.mrf.mxu0
    %v110 = vadd.f32 %v69, %v109
    %111 = vdwg.mxu0
    %112 = vmatpush.msra.mxu0 0.0
    %113 = vmatpush.msra.mxu0 0.0
    %114 = vmatpush.msra.mxu0 0.0
    %115 = vmatpush.msra.mxu0 0.0
    %116 = vmatpush.msra.mxu0 0.0
    %117 = vmatpush.msra.mxu0 0.0
    %118 = vmatpush.msra.mxu0 0.0
    %119 = vmatpush.msra.mxu0 0.0
    %120 = vmatpush.msra.mxu0 0.0
    %121 = vmatpush.msra.mxu0 0.0
    %122 = vmatpush.msra.mxu0 0.0
    %123 = vmatpush.msra.mxu0 0.0
    %v124 = vand.u32 %v34, 4294901760
    %v125 = vsub.f32 %v34, %v124
    %126 = vmatpush.msra.mxu0 %v125
    %v127 = vand.u32 %v30, 4294901760
    %v128 = vsub.f32 %v30, %v127
    %129 = vmatpush.msra.mxu0 %v128
    %v130 = vand.u32 %v26, 4294901760
    %v131 = vsub.f32 %v26, %v130
    %132 = vmatpush.msra.mxu0 %v131
    %v133 = vand.u32 %v22, 4294901760
    %v134 = vsub.f32 %v22, %v133
    %135 = vmatpush.msra.mxu0 %v134
    %v136 = vand.u32 %v40, 4294901760
    %v137 = vsub.f32 %v40, %v136
    %138 = vmatmul.f32.gmra.mxu0 %v137
    %v139 = vpop.f32.mrf.mxu0
    %v140 = vadd.f32 %v110, %v139
    %141 = vdwg.mxu0
    %142 = vmatpush.msra.mxu0 0.0
    %143 = vmatpush.msra.mxu0 0.0
    %144 = vmatpush.msra.mxu0 0.0
    %145 = vmatpush.msra.mxu0 0.0
    %146 = vmatpush.msra.mxu0 0.0
    %147 = vmatpush.msra.mxu0 0.0
    %148 = vmatpush.msra.mxu0 0.0
    %149 = vmatpush.msra.mxu0 0.0
    %150 = vmatpush.msra.mxu0 0.0
    %151 = vmatpush.msra.mxu0 0.0
    %152 = vmatpush.msra.mxu0 0.0
    %153 = vmatpush.msra.mxu0 0.0
    %v154 = vand.u32 %v34, 4294901760
    %155 = vmatpush.msra.mxu0 %v154
    %v156 = vand.u32 %v30, 4294901760
    %157 = vmatpush.msra.mxu0 %v156
    %v158 = vand.u32 %v26, 4294901760
    %159 = vmatpush.msra.mxu0 %v158
    %v160 = vand.u32 %v22, 4294901760
    %161 = vmatpush.msra.mxu0 %v160
    %v162 = vand.u32 %v40, 4294901760
    %v163 = vsub.f32 %v40, %v162
    %v164 = vand.u32 %v163, 4294901760
    %165 = vmatmul.f32.gmra.mxu0 %v164
    %v166 = vpop.f32.mrf.mxu0
    %v167 = vadd.f32 %v140, %v166
    %168 = vdwg.mxu0
    %169 = vmatpush.msra.mxu0 0.0
    %170 = vmatpush.msra.mxu0 0.0
    %171 = vmatpush.msra.mxu0 0.0
    %172 = vmatpush.msra.mxu0 0.0
    %173 = vmatpush.msra.mxu0 0.0
    %174 = vmatpush.msra.mxu0 0.0
    %175 = vmatpush.msra.mxu0 0.0
    %176 = vmatpush.msra.mxu0 0.0
    %177 = vmatpush.msra.mxu0 0.0
    %178 = vmatpush.msra.mxu0 0.0
    %179 = vmatpush.msra.mxu0 0.0
    %180 = vmatpush.msra.mxu0 0.0
    %v181 = vand.u32 %v34, 4294901760
    %v182 = vsub.f32 %v34, %v181
    %v183 = vand.u32 %v182, 4294901760
    %184 = vmatpush.msra.mxu0 %v183
    %v185 = vand.u32 %v30, 4294901760
    %v186 = vsub.f32 %v30, %v185
    %v187 = vand.u32 %v186, 4294901760
    %188 = vmatpush.msra.mxu0 %v187
    %v189 = vand.u32 %v26, 4294901760
    %v190 = vsub.f32 %v26, %v189
    %v191 = vand.u32 %v190, 4294901760
    %192 = vmatpush.msra.mxu0 %v191
    %v193 = vand.u32 %v22, 4294901760
    %v194 = vsub.f32 %v22, %v193
    %v195 = vand.u32 %v194, 4294901760
    %196 = vmatpush.msra.mxu0 %v195
    %v197 = vand.u32 %v40, 4294901760
    %198 = vmatmul.f32.gmra.mxu0 %v197
    %v199 = vpop.f32.mrf.mxu0
    %v200 = vadd.f32 %v167, %v199
    %201 = vdwg.mxu0
    %202 = vmatpush.msra.mxu0 0.0
    %203 = vmatpush.msra.mxu0 0.0
    %204 = vmatpush.msra.mxu0 0.0
    %205 = vmatpush.msra.mxu0 0.0
    %206 = vmatpush.msra.mxu0 0.0
    %207 = vmatpush.msra.mxu0 0.0
    %208 = vmatpush.msra.mxu0 0.0
    %209 = vmatpush.msra.mxu0 0.0
    %210 = vmatpush.msra.mxu0 0.0
    %211 = vmatpush.msra.mxu0 0.0
    %212 = vmatpush.msra.mxu0 0.0
    %213 = vmatpush.msra.mxu0 0.0
    %v214 = vand.u32 %v34, 4294901760
    %215 = vmatpush.msra.mxu0 %v214
    %v216 = vand.u32 %v30, 4294901760
    %217 = vmatpush.msra.mxu0 %v216
    %v218 = vand.u32 %v26, 4294901760
    %219 = vmatpush.msra.mxu0 %v218
    %v220 = vand.u32 %v22, 4294901760
    %221 = vmatpush.msra.mxu0 %v220
    %v222 = vand.u32 %v40, 4294901760
    %223 = vmatmul.f32.gmra.mxu0 %v222
    %v224 = vpop.f32.mrf.mxu0
    %v225 = vadd.f32 %v200, %v224
    %226 = vdwg.mxu0
    %227 = vmatpush.msra.mxu0 0.0
    %228 = vmatpush.msra.mxu0 0.0
    %229 = vmatpush.msra.mxu0 0.0
    %230 = vmatpush.msra.mxu0 0.0
    %231 = vmatpush.msra.mxu0 0.0
    %232 = vmatpush.msra.mxu0 0.0
    %233 = vmatpush.msra.mxu0 0.0
    %234 = vmatpush.msra.mxu0 0.0
    %235 = vmatpush.msra.mxu0 0.0
    %236 = vmatpush.msra.mxu0 0.0
    %237 = vmatpush.msra.mxu0 0.0
    %238 = vmatpush.msra.mxu0 0.0
    %v239 = vand.u32 %v35, 4294901760
    %240 = vmatpush.msra.mxu0 %v239
    %v241 = vand.u32 %v31, 4294901760
    %242 = vmatpush.msra.mxu0 %v241
    %v243 = vand.u32 %v27, 4294901760
    %244 = vmatpush.msra.mxu0 %v243
    %v245 = vand.u32 %v23, 4294901760
    %246 = vmatpush.msra.mxu0 %v245
    %v247 = vand.u32 %v40, 4294901760
    %v248 = vsub.f32 %v40, %v247
    %v249 = vand.u32 %v248, 4294901760
    %v250 = vsub.f32 %v248, %v249
    %v251 = vand.u32 %v250, 4294901760
    %252 = vmatmul.f32.gmra.mxu0 %v251
    %v253 = vpop.f32.mrf.mxu0
    %v254 = vadd.f32 0.0, %v253
    %255 = vdwg.mxu0
    %256 = vmatpush.msra.mxu0 0.0
    %257 = vmatpush.msra.mxu0 0.0
    %258 = vmatpush.msra.mxu0 0.0
    %259 = vmatpush.msra.mxu0 0.0
    %260 = vmatpush.msra.mxu0 0.0
    %261 = vmatpush.msra.mxu0 0.0
    %262 = vmatpush.msra.mxu0 0.0
    %263 = vmatpush.msra.mxu0 0.0
    %264 = vmatpush.msra.mxu0 0.0
    %265 = vmatpush.msra.mxu0 0.0
    %266 = vmatpush.msra.mxu0 0.0
    %267 = vmatpush.msra.mxu0 0.0
    %v268 = vand.u32 %v35, 4294901760
    %v269 = vsub.f32 %v35, %v268
    %v270 = vand.u32 %v269, 4294901760
    %v271 = vsub.f32 %v269, %v270
    %v272 = vand.u32 %v271, 4294901760
    %273 = vmatpush.msra.mxu0 %v272
    %v274 = vand.u32 %v31, 4294901760
    %v275 = vsub.f32 %v31, %v274
    %v276 = vand.u32 %v275, 4294901760
    %v277 = vsub.f32 %v275, %v276
    %v278 = vand.u32 %v277, 4294901760
    %279 = vmatpush.msra.mxu0 %v278
    %v280 = vand.u32 %v27, 4294901760
    %v281 = vsub.f32 %v27, %v280
    %v282 = vand.u32 %v281, 4294901760
    %v283 = vsub.f32 %v281, %v282
    %v284 = vand.u32 %v283, 4294901760
    %285 = vmatpush.msra.mxu0 %v284
    %v286 = vand.u32 %v23, 4294901760
    %v287 = vsub.f32 %v23, %v286
    %v288 = vand.u32 %v287, 4294901760
    %v289 = vsub.f32 %v287, %v288
    %v290 = vand.u32 %v289, 4294901760
    %291 = vmatpush.msra.mxu0 %v290
    %v292 = vand.u32 %v40, 4294901760
    %293 = vmatmul.f32.gmra.mxu0 %v292
    %v294 = vpop.f32.mrf.mxu0
    %v295 = vadd.f32 %v254, %v294
    %296 = vdwg.mxu0
    %297 = vmatpush.msra.mxu0 0.0
    %298 = vmatpush.msra.mxu0 0.0
    %299 = vmatpush.msra.mxu0 0.0
    %300 = vmatpush.msra.mxu0 0.0
    %301 = vmatpush.msra.mxu0 0.0
    %302 = vmatpush.msra.mxu0 0.0
    %303 = vmatpush.msra.mxu0 0.0
    %304 = vmatpush.msra.mxu0 0.0
    %305 = vmatpush.msra.mxu0 0.0
    %306 = vmatpush.msra.mxu0 0.0
    %307 = vmatpush.msra.mxu0 0.0
    %308 = vmatpush.msra.mxu0 0.0
    %v309 = vand.u32 %v35, 4294901760
    %v310 = vsub.f32 %v35, %v309
    %311 = vmatpush.msra.mxu0 %v310
    %v312 = vand.u32 %v31, 4294901760
    %v313 = vsub.f32 %v31, %v312
    %314 = vmatpush.msra.mxu0 %v313
    %v315 = vand.u32 %v27, 4294901760
    %v316 = vsub.f32 %v27, %v315
    %317 = vmatpush.msra.mxu0 %v316
    %v318 = vand.u32 %v23, 4294901760
    %v319 = vsub.f32 %v23, %v318
    %320 = vmatpush.msra.mxu0 %v319
    %v321 = vand.u32 %v40, 4294901760
    %v322 = vsub.f32 %v40, %v321
    %323 = vmatmul.f32.gmra.mxu0 %v322
    %v324 = vpop.f32.mrf.mxu0
    %v325 = vadd.f32 %v295, %v324
    %326 = vdwg.mxu0
    %327 = vmatpush.msra.mxu0 0.0
    %328 = vmatpush.msra.mxu0 0.0
    %329 = vmatpush.msra.mxu0 0.0
    %330 = vmatpush.msra.mxu0 0.0
    %331 = vmatpush.msra.mxu0 0.0
    %332 = vmatpush.msra.mxu0 0.0
    %333 = vmatpush.msra.mxu0 0.0
    %334 = vmatpush.msra.mxu0 0.0
    %335 = vmatpush.msra.mxu0 0.0
    %336 = vmatpush.msra.mxu0 0.0
    %337 = vmatpush.msra.mxu0 0.0
    %338 = vmatpush.msra.mxu0 0.0
    %v339 = vand.u32 %v35, 4294901760
    %340 = vmatpush.msra.mxu0 %v339
    %v341 = vand.u32 %v31, 4294901760
    %342 = vmatpush.msra.mxu0 %v341
    %v343 = vand.u32 %v27, 4294901760
    %344 = vmatpush.msra.mxu0 %v343
    %v345 = vand.u32 %v23, 4294901760
    %346 = vmatpush.msra.mxu0 %v345
    %v347 = vand.u32 %v40, 4294901760
    %v348 = vsub.f32 %v40, %v347
    %v349 = vand.u32 %v348, 4294901760
    %350 = vmatmul.f32.gmra.mxu0 %v349
    %v351 = vpop.f32.mrf.mxu0
    %v352 = vadd.f32 %v325, %v351
    %353 = vdwg.mxu0
    %354 = vmatpush.msra.mxu0 0.0
    %355 = vmatpush.msra.mxu0 0.0
    %356 = vmatpush.msra.mxu0 0.0
    %357 = vmatpush.msra.mxu0 0.0
    %358 = vmatpush.msra.mxu0 0.0
    %359 = vmatpush.msra.mxu0 0.0
    %360 = vmatpush.msra.mxu0 0.0
    %361 = vmatpush.msra.mxu0 0.0
    %362 = vmatpush.msra.mxu0 0.0
    %363 = vmatpush.msra.mxu0 0.0
    %364 = vmatpush.msra.mxu0 0.0
    %365 = vmatpush.msra.mxu0 0.0
    %v366 = vand.u32 %v35, 4294901760
    %v367 = vsub.f32 %v35, %v366
    %v368 = vand.u32 %v367, 4294901760
    %369 = vmatpush.msra.mxu0 %v368
    %v370 = vand.u32 %v31, 4294901760
    %v371 = vsub.f32 %v31, %v370
    %v372 = vand.u32 %v371, 4294901760
    %373 = vmatpush.msra.mxu0 %v372
    %v374 = vand.u32 %v27, 4294901760
    %v375 = vsub.f32 %v27, %v374
    %v376 = vand.u32 %v375, 4294901760
    %377 = vmatpush.msra.mxu0 %v376
    %v378 = vand.u32 %v23, 4294901760
    %v379 = vsub.f32 %v23, %v378
    %v380 = vand.u32 %v379, 4294901760
    %381 = vmatpush.msra.mxu0 %v380
    %v382 = vand.u32 %v40, 4294901760
    %383 = vmatmul.f32.gmra.mxu0 %v382
    %v384 = vpop.f32.mrf.mxu0
    %v385 = vadd.f32 %v352, %v384
    %386 = vdwg.mxu0
    %387 = vmatpush.msra.mxu0 0.0
    %388 = vmatpush.msra.mxu0 0.0
    %389 = vmatpush.msra.mxu0 0.0
    %390 = vmatpush.msra.mxu0 0.0
    %391 = vmatpush.msra.mxu0 0.0
    %392 = vmatpush.msra.mxu0 0.0
    %393 = vmatpush.msra.mxu0 0.0
    %394 = vmatpush.msra.mxu0 0.0
    %395 = vmatpush.msra.mxu0 0.0
    %396 = vmatpush.msra.mxu0 0.0
    %397 = vmatpush.msra.mxu0 0.0
    %398 = vmatpush.msra.mxu0 0.0
    %v399 = vand.u32 %v35, 4294901760
    %400 = vmatpush.msra.mxu0 %v399
    %v401 = vand.u32 %v31, 4294901760
    %402 = vmatpush.msra.mxu0 %v401
    %v403 = vand.u32 %v27, 4294901760
    %404 = vmatpush.msra.mxu0 %v403
    %v405 = vand.u32 %v23, 4294901760
    %406 = vmatpush.msra.mxu0 %v405
    %v407 = vand.u32 %v40, 4294901760
    %408 = vmatmul.f32.gmra.mxu0 %v407
    %v409 = vpop.f32.mrf.mxu0
    %v410 = vadd.f32 %v385, %v409
    %411 = vdwg.mxu0
    %412 = vmatpush.msra.mxu0 0.0
    %413 = vmatpush.msra.mxu0 0.0
    %414 = vmatpush.msra.mxu0 0.0
    %415 = vmatpush.msra.mxu0 0.0
    %416 = vmatpush.msra.mxu0 0.0
    %417 = vmatpush.msra.mxu0 0.0
    %418 = vmatpush.msra.mxu0 0.0
    %419 = vmatpush.msra.mxu0 0.0
    %420 = vmatpush.msra.mxu0 0.0
    %421 = vmatpush.msra.mxu0 0.0
    %422 = vmatpush.msra.mxu0 0.0
    %423 = vmatpush.msra.mxu0 0.0
    %v424 = vand.u32 %v36, 4294901760
    %425 = vmatpush.msra.mxu0 %v424
    %v426 = vand.u32 %v32, 4294901760
    %427 = vmatpush.msra.mxu0 %v426
    %v428 = vand.u32 %v28, 4294901760
    %429 = vmatpush.msra.mxu0 %v428
    %v430 = vand.u32 %v24, 4294901760
    %431 = vmatpush.msra.mxu0 %v430
    %v432 = vand.u32 %v40, 4294901760
    %v433 = vsub.f32 %v40, %v432
    %v434 = vand.u32 %v433, 4294901760
    %v435 = vsub.f32 %v433, %v434
    %v436 = vand.u32 %v435, 4294901760
    %437 = vmatmul.f32.gmra.mxu0 %v436
    %v438 = vpop.f32.mrf.mxu0
    %v439 = vadd.f32 0.0, %v438
    %440 = vdwg.mxu0
    %441 = vmatpush.msra.mxu0 0.0
    %442 = vmatpush.msra.mxu0 0.0
    %443 = vmatpush.msra.mxu0 0.0
    %444 = vmatpush.msra.mxu0 0.0
    %445 = vmatpush.msra.mxu0 0.0
    %446 = vmatpush.msra.mxu0 0.0
    %447 = vmatpush.msra.mxu0 0.0
    %448 = vmatpush.msra.mxu0 0.0
    %449 = vmatpush.msra.mxu0 0.0
    %450 = vmatpush.msra.mxu0 0.0
    %451 = vmatpush.msra.mxu0 0.0
    %452 = vmatpush.msra.mxu0 0.0
    %v453 = vand.u32 %v36, 4294901760
    %v454 = vsub.f32 %v36, %v453
    %v455 = vand.u32 %v454, 4294901760
    %v456 = vsub.f32 %v454, %v455
    %v457 = vand.u32 %v456, 4294901760
    %458 = vmatpush.msra.mxu0 %v457
    %v459 = vand.u32 %v32, 4294901760
    %v460 = vsub.f32 %v32, %v459
    %v461 = vand.u32 %v460, 4294901760
    %v462 = vsub.f32 %v460, %v461
    %v463 = vand.u32 %v462, 4294901760
    %464 = vmatpush.msra.mxu0 %v463
    %v465 = vand.u32 %v28, 4294901760
    %v466 = vsub.f32 %v28, %v465
    %v467 = vand.u32 %v466, 4294901760
    %v468 = vsub.f32 %v466, %v467
    %v469 = vand.u32 %v468, 4294901760
    %470 = vmatpush.msra.mxu0 %v469
    %v471 = vand.u32 %v24, 4294901760
    %v472 = vsub.f32 %v24, %v471
    %v473 = vand.u32 %v472, 4294901760
    %v474 = vsub.f32 %v472, %v473
    %v475 = vand.u32 %v474, 4294901760
    %476 = vmatpush.msra.mxu0 %v475
    %v477 = vand.u32 %v40, 4294901760
    %478 = vmatmul.f32.gmra.mxu0 %v477
    %v479 = vpop.f32.mrf.mxu0
    %v480 = vadd.f32 %v439, %v479
    %481 = vdwg.mxu0
    %482 = vmatpush.msra.mxu0 0.0
    %483 = vmatpush.msra.mxu0 0.0
    %484 = vmatpush.msra.mxu0 0.0
    %485 = vmatpush.msra.mxu0 0.0
    %486 = vmatpush.msra.mxu0 0.0
    %487 = vmatpush.msra.mxu0 0.0
    %488 = vmatpush.msra.mxu0 0.0
    %489 = vmatpush.msra.mxu0 0.0
    %490 = vmatpush.msra.mxu0 0.0
    %491 = vmatpush.msra.mxu0 0.0
    %492 = vmatpush.msra.mxu0 0.0
    %493 = vmatpush.msra.mxu0 0.0
    %v494 = vand.u32 %v36, 4294901760
    %v495 = vsub.f32 %v36, %v494
    %496 = vmatpush.msra.mxu0 %v495
    %v497 = vand.u32 %v32, 4294901760
    %v498 = vsub.f32 %v32, %v497
    %499 = vmatpush.msra.mxu0 %v498
    %v500 = vand.u32 %v28, 4294901760
    %v501 = vsub.f32 %v28, %v500
    %502 = vmatpush.msra.mxu0 %v501
    %v503 = vand.u32 %v24, 4294901760
    %v504 = vsub.f32 %v24, %v503
    %505 = vmatpush.msra.mxu0 %v504
    %v506 = vand.u32 %v40, 4294901760
    %v507 = vsub.f32 %v40, %v506
    %508 = vmatmul.f32.gmra.mxu0 %v507
    %v509 = vpop.f32.mrf.mxu0
    %v510 = vadd.f32 %v480, %v509
    %511 = vdwg.mxu0
    %512 = vmatpush.msra.mxu0 0.0
    %513 = vmatpush.msra.mxu0 0.0
    %514 = vmatpush.msra.mxu0 0.0
    %515 = vmatpush.msra.mxu0 0.0
    %516 = vmatpush.msra.mxu0 0.0
    %517 = vmatpush.msra.mxu0 0.0
    %518 = vmatpush.msra.mxu0 0.0
    %519 = vmatpush.msra.mxu0 0.0
    %520 = vmatpush.msra.mxu0 0.0
    %521 = vmatpush.msra.mxu0 0.0
    %522 = vmatpush.msra.mxu0 0.0
    %523 = vmatpush.msra.mxu0 0.0
    %v524 = vand.u32 %v36, 4294901760
    %525 = vmatpush.msra.mxu0 %v524
    %v526 = vand.u32 %v32, 4294901760
    %527 = vmatpush.msra.mxu0 %v526
    %v528 = vand.u32 %v28, 4294901760
    %529 = vmatpush.msra.mxu0 %v528
    %v530 = vand.u32 %v24, 4294901760
    %531 = vmatpush.msra.mxu0 %v530
    %v532 = vand.u32 %v40, 4294901760
    %v533 = vsub.f32 %v40, %v532
    %v534 = vand.u32 %v533, 4294901760
    %535 = vmatmul.f32.gmra.mxu0 %v534
    %v536 = vpop.f32.mrf.mxu0
    %v537 = vadd.f32 %v510, %v536
    %538 = vdwg.mxu0
    %539 = vmatpush.msra.mxu0 0.0
    %540 = vmatpush.msra.mxu0 0.0
    %541 = vmatpush.msra.mxu0 0.0
    %542 = vmatpush.msra.mxu0 0.0
    %543 = vmatpush.msra.mxu0 0.0
    %544 = vmatpush.msra.mxu0 0.0
    %545 = vmatpush.msra.mxu0 0.0
    %546 = vmatpush.msra.mxu0 0.0
    %547 = vmatpush.msra.mxu0 0.0
    %548 = vmatpush.msra.mxu0 0.0
    %549 = vmatpush.msra.mxu0 0.0
    %550 = vmatpush.msra.mxu0 0.0
    %v551 = vand.u32 %v36, 4294901760
    %v552 = vsub.f32 %v36, %v551
    %v553 = vand.u32 %v552, 4294901760
    %554 = vmatpush.msra.mxu0 %v553
    %v555 = vand.u32 %v32, 4294901760
    %v556 = vsub.f32 %v32, %v555
    %v557 = vand.u32 %v556, 4294901760
    %558 = vmatpush.msra.mxu0 %v557
    %v559 = vand.u32 %v28, 4294901760
    %v560 = vsub.f32 %v28, %v559
    %v561 = vand.u32 %v560, 4294901760
    %562 = vmatpush.msra.mxu0 %v561
    %v563 = vand.u32 %v24, 4294901760
    %v564 = vsub.f32 %v24, %v563
    %v565 = vand.u32 %v564, 4294901760
    %566 = vmatpush.msra.mxu0 %v565
    %v567 = vand.u32 %v40, 4294901760
    %568 = vmatmul.f32.gmra.mxu0 %v567
    %v569 = vpop.f32.mrf.mxu0
    %v570 = vadd.f32 %v537, %v569
    %571 = vdwg.mxu0
    %572 = vmatpush.msra.mxu0 0.0
    %573 = vmatpush.msra.mxu0 0.0
    %574 = vmatpush.msra.mxu0 0.0
    %575 = vmatpush.msra.mxu0 0.0
    %576 = vmatpush.msra.mxu0 0.0
    %577 = vmatpush.msra.mxu0 0.0
    %578 = vmatpush.msra.mxu0 0.0
    %579 = vmatpush.msra.mxu0 0.0
    %580 = vmatpush.msra.mxu0 0.0
    %581 = vmatpush.msra.mxu0 0.0
    %582 = vmatpush.msra.mxu0 0.0
    %583 = vmatpush.msra.mxu0 0.0
    %v584 = vand.u32 %v36, 4294901760
    %585 = vmatpush.msra.mxu0 %v584
    %v586 = vand.u32 %v32, 4294901760
    %587 = vmatpush.msra.mxu0 %v586
    %v588 = vand.u32 %v28, 4294901760
    %589 = vmatpush.msra.mxu0 %v588
    %v590 = vand.u32 %v24, 4294901760
    %591 = vmatpush.msra.mxu0 %v590
    %v592 = vand.u32 %v40, 4294901760
    %593 = vmatmul.f32.gmra.mxu0 %v592
    %v594 = vpop.f32.mrf.mxu0
    %v595 = vadd.f32 %v570, %v594
    %596 = vdwg.mxu0
    %597 = vmatpush.msra.mxu0 0.0
    %598 = vmatpush.msra.mxu0 0.0
    %599 = vmatpush.msra.mxu0 0.0
    %600 = vmatpush.msra.mxu0 0.0
    %601 = vmatpush.msra.mxu0 0.0
    %602 = vmatpush.msra.mxu0 0.0
    %603 = vmatpush.msra.mxu0 0.0
    %604 = vmatpush.msra.mxu0 0.0
    %605 = vmatpush.msra.mxu0 0.0
    %606 = vmatpush.msra.mxu0 0.0
    %607 = vmatpush.msra.mxu0 0.0
    %608 = vmatpush.msra.mxu0 0.0
    %v609 = vand.u32 %v37, 4294901760
    %610 = vmatpush.msra.mxu0 %v609
    %v611 = vand.u32 %v33, 4294901760
    %612 = vmatpush.msra.mxu0 %v611
    %v613 = vand.u32 %v29, 4294901760
    %614 = vmatpush.msra.mxu0 %v613
    %v615 = vand.u32 %v25, 4294901760
    %616 = vmatpush.msra.mxu0 %v615
    %v617 = vand.u32 %v40, 4294901760
    %v618 = vsub.f32 %v40, %v617
    %v619 = vand.u32 %v618, 4294901760
    %v620 = vsub.f32 %v618, %v619
    %v621 = vand.u32 %v620, 4294901760
    %622 = vmatmul.f32.gmra.mxu0 %v621
    %v623 = vpop.f32.mrf.mxu0
    %v624 = vadd.f32 0.0, %v623
    %625 = vdwg.mxu0
    %626 = vmatpush.msra.mxu0 0.0
    %627 = vmatpush.msra.mxu0 0.0
    %628 = vmatpush.msra.mxu0 0.0
    %629 = vmatpush.msra.mxu0 0.0
    %630 = vmatpush.msra.mxu0 0.0
    %631 = vmatpush.msra.mxu0 0.0
    %632 = vmatpush.msra.mxu0 0.0
    %633 = vmatpush.msra.mxu0 0.0
    %634 = vmatpush.msra.mxu0 0.0
    %635 = vmatpush.msra.mxu0 0.0
    %636 = vmatpush.msra.mxu0 0.0
    %637 = vmatpush.msra.mxu0 0.0
    %v638 = vand.u32 %v37, 4294901760
    %v639 = vsub.f32 %v37, %v638
    %v640 = vand.u32 %v639, 4294901760
    %v641 = vsub.f32 %v639, %v640
    %v642 = vand.u32 %v641, 4294901760
    %643 = vmatpush.msra.mxu0 %v642
    %v644 = vand.u32 %v33, 4294901760
    %v645 = vsub.f32 %v33, %v644
    %v646 = vand.u32 %v645, 4294901760
    %v647 = vsub.f32 %v645, %v646
    %v648 = vand.u32 %v647, 4294901760
    %649 = vmatpush.msra.mxu0 %v648
    %v650 = vand.u32 %v29, 4294901760
    %v651 = vsub.f32 %v29, %v650
    %v652 = vand.u32 %v651, 4294901760
    %v653 = vsub.f32 %v651, %v652
    %v654 = vand.u32 %v653, 4294901760
    %655 = vmatpush.msra.mxu0 %v654
    %v656 = vand.u32 %v25, 4294901760
    %v657 = vsub.f32 %v25, %v656
    %v658 = vand.u32 %v657, 4294901760
    %v659 = vsub.f32 %v657, %v658
    %v660 = vand.u32 %v659, 4294901760
    %661 = vmatpush.msra.mxu0 %v660
    %v662 = vand.u32 %v40, 4294901760
    %663 = vmatmul.f32.gmra.mxu0 %v662
    %v664 = vpop.f32.mrf.mxu0
    %v665 = vadd.f32 %v624, %v664
    %666 = vdwg.mxu0
    %667 = vmatpush.msra.mxu0 0.0
    %668 = vmatpush.msra.mxu0 0.0
    %669 = vmatpush.msra.mxu0 0.0
    %670 = vmatpush.msra.mxu0 0.0
    %671 = vmatpush.msra.mxu0 0.0
    %672 = vmatpush.msra.mxu0 0.0
    %673 = vmatpush.msra.mxu0 0.0
    %674 = vmatpush.msra.mxu0 0.0
    %675 = vmatpush.msra.mxu0 0.0
    %676 = vmatpush.msra.mxu0 0.0
    %677 = vmatpush.msra.mxu0 0.0
    %678 = vmatpush.msra.mxu0 0.0
    %v679 = vand.u32 %v37, 4294901760
    %v680 = vsub.f32 %v37, %v679
    %681 = vmatpush.msra.mxu0 %v680
    %v682 = vand.u32 %v33, 4294901760
    %v683 = vsub.f32 %v33, %v682
    %684 = vmatpush.msra.mxu0 %v683
    %v685 = vand.u32 %v29, 4294901760
    %v686 = vsub.f32 %v29, %v685
    %687 = vmatpush.msra.mxu0 %v686
    %v688 = vand.u32 %v25, 4294901760
    %v689 = vsub.f32 %v25, %v688
    %690 = vmatpush.msra.mxu0 %v689
    %v691 = vand.u32 %v40, 4294901760
    %v692 = vsub.f32 %v40, %v691
    %693 = vmatmul.f32.gmra.mxu0 %v692
    %v694 = vpop.f32.mrf.mxu0
    %v695 = vadd.f32 %v665, %v694
    %696 = vdwg.mxu0
    %697 = vmatpush.msra.mxu0 0.0
    %698 = vmatpush.msra.mxu0 0.0
    %699 = vmatpush.msra.mxu0 0.0
    %700 = vmatpush.msra.mxu0 0.0
    %701 = vmatpush.msra.mxu0 0.0
    %702 = vmatpush.msra.mxu0 0.0
    %703 = vmatpush.msra.mxu0 0.0
    %704 = vmatpush.msra.mxu0 0.0
    %705 = vmatpush.msra.mxu0 0.0
    %706 = vmatpush.msra.mxu0 0.0
    %707 = vmatpush.msra.mxu0 0.0
    %708 = vmatpush.msra.mxu0 0.0
    %v709 = vand.u32 %v37, 4294901760
    %710 = vmatpush.msra.mxu0 %v709
    %v711 = vand.u32 %v33, 4294901760
    %712 = vmatpush.msra.mxu0 %v711
    %v713 = vand.u32 %v29, 4294901760
    %714 = vmatpush.msra.mxu0 %v713
    %v715 = vand.u32 %v25, 4294901760
    %716 = vmatpush.msra.mxu0 %v715
    %v717 = vand.u32 %v40, 4294901760
    %v718 = vsub.f32 %v40, %v717
    %v719 = vand.u32 %v718, 4294901760
    %720 = vmatmul.f32.gmra.mxu0 %v719
    %v721 = vpop.f32.mrf.mxu0
    %v722 = vadd.f32 %v695, %v721
    %723 = vdwg.mxu0
    %724 = vmatpush.msra.mxu0 0.0
    %725 = vmatpush.msra.mxu0 0.0
    %726 = vmatpush.msra.mxu0 0.0
    %727 = vmatpush.msra.mxu0 0.0
    %728 = vmatpush.msra.mxu0 0.0
    %729 = vmatpush.msra.mxu0 0.0
    %730 = vmatpush.msra.mxu0 0.0
    %731 = vmatpush.msra.mxu0 0.0
    %732 = vmatpush.msra.mxu0 0.0
    %733 = vmatpush.msra.mxu0 0.0
    %734 = vmatpush.msra.mxu0 0.0
    %735 = vmatpush.msra.mxu0 0.0
    %v736 = vand.u32 %v37, 4294901760
    %v737 = vsub.f32 %v37, %v736
    %v738 = vand.u32 %v737, 4294901760
    %739 = vmatpush.msra.mxu0 %v738
    %v740 = vand.u32 %v33, 4294901760
    %v741 = vsub.f32 %v33, %v740
    %v742 = vand.u32 %v741, 4294901760
    %743 = vmatpush.msra.mxu0 %v742
    %v744 = vand.u32 %v29, 4294901760
    %v745 = vsub.f32 %v29, %v744
    %v746 = vand.u32 %v745, 4294901760
    %747 = vmatpush.msra.mxu0 %v746
    %v748 = vand.u32 %v25, 4294901760
    %v749 = vsub.f32 %v25, %v748
    %v750 = vand.u32 %v749, 4294901760
    %751 = vmatpush.msra.mxu0 %v750
    %v752 = vand.u32 %v40, 4294901760
    %753 = vmatmul.f32.gmra.mxu0 %v752
    %v754 = vpop.f32.mrf.mxu0
    %v755 = vadd.f32 %v722, %v754
    %756 = vdwg.mxu0
    %757 = vmatpush.msra.mxu0 0.0
    %758 = vmatpush.msra.mxu0 0.0
    %759 = vmatpush.msra.mxu0 0.0
    %760 = vmatpush.msra.mxu0 0.0
    %761 = vmatpush.msra.mxu0 0.0
    %762 = vmatpush.msra.mxu0 0.0
    %763 = vmatpush.msra.mxu0 0.0
    %764 = vmatpush.msra.mxu0 0.0
    %765 = vmatpush.msra.mxu0 0.0
    %766 = vmatpush.msra.mxu0 0.0
    %767 = vmatpush.msra.mxu0 0.0
    %768 = vmatpush.msra.mxu0 0.0
    %v769 = vand.u32 %v37, 4294901760
    %770 = vmatpush.msra.mxu0 %v769
    %v771 = vand.u32 %v33, 4294901760
    %772 = vmatpush.msra.mxu0 %v771
    %v773 = vand.u32 %v29, 4294901760
    %774 = vmatpush.msra.mxu0 %v773
    %v775 = vand.u32 %v25, 4294901760
    %776 = vmatpush.msra.mxu0 %v775
    %v777 = vand.u32 %v40, 4294901760
    %778 = vmatmul.f32.gmra.mxu0 %v777
    %v779 = vpop.f32.mrf.mxu0
    %v780 = vadd.f32 %v755, %v779
    %781 = vdwg.mxu0
    %v782 = vld [vmem:[%s2] sm:$0xff]
    %v783 = vld [vmem:[%s2 + $0x8] sm:$0xff]
    %v784 = vld [vmem:[%s2 + $0x10] sm:$0xff]
    %v785 = vld [vmem:[%s2 + $0x18] sm:$0xff]
    %v786 = vmul.f32 %v782, %v225
    %v787 = vmul.f32 %v783, %v410
    %v788 = vmul.f32 %v784, %v595
    %v789 = vmul.f32 %v785, %v780
    %v790 = vld [vmem:[%s1] sm:$0xff]
    %v791 = vld [vmem:[%s1 + $0x8] sm:$0xff]
    %v792 = vld [vmem:[%s1 + $0x10] sm:$0xff]
    %v793 = vld [vmem:[%s1 + $0x18] sm:$0xff]
    %v794 = vld [vmem:[%s1 + $0x20] sm:$0xff]
    %v795 = vld [vmem:[%s1 + $0x28] sm:$0xff]
    %v796 = vld [vmem:[%s1 + $0x30] sm:$0xff]
    %v797 = vld [vmem:[%s1 + $0x38] sm:$0xff]
    %v798 = vld [vmem:[%s1 + $0x40] sm:$0xff]
    %v799 = vld [vmem:[%s1 + $0x48] sm:$0xff]
    %v800 = vld [vmem:[%s1 + $0x50] sm:$0xff]
    %v801 = vld [vmem:[%s1 + $0x58] sm:$0xff]
    %v802 = vld [vmem:[%s1 + $0x60] sm:$0xff]
    %v803 = vld [vmem:[%s1 + $0x68] sm:$0xff]
    %v804 = vld [vmem:[%s1 + $0x70] sm:$0xff]
    %v805 = vld [vmem:[%s1 + $0x78] sm:$0xff]
    %v806 = vld [vmem:[%s1 + $0x80] sm:$0xff]
    %v807 = vld [vmem:[%s1 + $0x88] sm:$0xff]
    %v808 = vld [vmem:[%s1 + $0x90] sm:$0xff]
    %v809 = vld [vmem:[%s1 + $0x98] sm:$0xff]
    %v810 = vld [vmem:[%s1 + $0xa0] sm:$0xff]
    %v811 = vld [vmem:[%s1 + $0xa8] sm:$0xff]
    %v812 = vld [vmem:[%s1 + $0xb0] sm:$0xff]
    %v813 = vld [vmem:[%s1 + $0xb8] sm:$0xff]
    %v814 = vld [vmem:[%s1 + $0xc0] sm:$0xff]
    %v815 = vld [vmem:[%s1 + $0xc8] sm:$0xff]
    %v816 = vld [vmem:[%s1 + $0xd0] sm:$0xff]
    %v817 = vld [vmem:[%s1 + $0xd8] sm:$0xff]
    %v818 = vld [vmem:[%s1 + $0xe0] sm:$0xff]
    %v819 = vld [vmem:[%s1 + $0xe8] sm:$0xff]
    %v820 = vld [vmem:[%s1 + $0xf0] sm:$0xff]
    %v821 = vld [vmem:[%s1 + $0xf8] sm:$0xff]
    %v822 = vld [vmem:[%s1 + $0x100] sm:$0xff]
    %v823 = vld [vmem:[%s1 + $0x108] sm:$0xff]
    %v824 = vld [vmem:[%s1 + $0x110] sm:$0xff]
    %v825 = vld [vmem:[%s1 + $0x118] sm:$0xff]
    %v826 = vld [vmem:[%s1 + $0x120] sm:$0xff]
    %v827 = vld [vmem:[%s1 + $0x128] sm:$0xff]
    %v828 = vld [vmem:[%s1 + $0x130] sm:$0xff]
    %v829 = vld [vmem:[%s1 + $0x138] sm:$0xff]
    %v830 = vld [vmem:[%s1 + $0x140] sm:$0xff]
    %v831 = vld [vmem:[%s1 + $0x148] sm:$0xff]
    %v832 = vld [vmem:[%s1 + $0x150] sm:$0xff]
    %v833 = vld [vmem:[%s1 + $0x158] sm:$0xff]
    %v834 = vld [vmem:[%s1 + $0x160] sm:$0xff]
    %v835 = vld [vmem:[%s1 + $0x168] sm:$0xff]
    %v836 = vld [vmem:[%s1 + $0x170] sm:$0xff]
    %v837 = vld [vmem:[%s1 + $0x178] sm:$0xff]
    %v838 = vld [vmem:[%s1 + $0x180] sm:$0xff]
    %v839 = vld [vmem:[%s1 + $0x188] sm:$0xff]
    %v840 = vld [vmem:[%s1 + $0x190] sm:$0xff]
    %v841 = vld [vmem:[%s1 + $0x198] sm:$0xff]
    %v842 = vld [vmem:[%s1 + $0x1a0] sm:$0xff]
    %v843 = vld [vmem:[%s1 + $0x1a8] sm:$0xff]
    %v844 = vld [vmem:[%s1 + $0x1b0] sm:$0xff]
    %v845 = vld [vmem:[%s1 + $0x1b8] sm:$0xff]
    %v846 = vld [vmem:[%s1 + $0x1c0] sm:$0xff]
    %v847 = vld [vmem:[%s1 + $0x1c8] sm:$0xff]
    %v848 = vld [vmem:[%s1 + $0x1d0] sm:$0xff]
    %v849 = vld [vmem:[%s1 + $0x1d8] sm:$0xff]
    %v850 = vld [vmem:[%s1 + $0x1e0] sm:$0xff]
    %v851 = vld [vmem:[%s1 + $0x1e8] sm:$0xff]
    %v852 = vld [vmem:[%s1 + $0x1f0] sm:$0xff]
    %v853 = vld [vmem:[%s1 + $0x1f8] sm:$0xff]
    %v854 = vld [vmem:[%s4] sm:$0xff]
    %v855 = vand.u32 %v805, 4294901760
    %856 = vmatpush.msra.mxu0 %v855
    %v857 = vand.u32 %v804, 4294901760
    %858 = vmatpush.msra.mxu0 %v857
    %v859 = vand.u32 %v803, 4294901760
    %860 = vmatpush.msra.mxu0 %v859
    %v861 = vand.u32 %v802, 4294901760
    %862 = vmatpush.msra.mxu0 %v861
    %v863 = vand.u32 %v801, 4294901760
    %864 = vmatpush.msra.mxu0 %v863
    %v865 = vand.u32 %v800, 4294901760
    %866 = vmatpush.msra.mxu0 %v865
    %v867 = vand.u32 %v799, 4294901760
    %868 = vmatpush.msra.mxu0 %v867
    %v869 = vand.u32 %v798, 4294901760
    %870 = vmatpush.msra.mxu0 %v869
    %v871 = vand.u32 %v797, 4294901760
    %872 = vmatpush.msra.mxu0 %v871
    %v873 = vand.u32 %v796, 4294901760
    %874 = vmatpush.msra.mxu0 %v873
    %v875 = vand.u32 %v795, 4294901760
    %876 = vmatpush.msra.mxu0 %v875
    %v877 = vand.u32 %v794, 4294901760
    %878 = vmatpush.msra.mxu0 %v877
    %v879 = vand.u32 %v793, 4294901760
    %880 = vmatpush.msra.mxu0 %v879
    %v881 = vand.u32 %v792, 4294901760
    %882 = vmatpush.msra.mxu0 %v881
    %v883 = vand.u32 %v791, 4294901760
    %884 = vmatpush.msra.mxu0 %v883
    %v885 = vand.u32 %v790, 4294901760
    %886 = vmatpush.msra.mxu0 %v885
    %v887 = vand.u32 %v786, 4294901760
    %v888 = vsub.f32 %v786, %v887
    %v889 = vand.u32 %v888, 4294901760
    %v890 = vsub.f32 %v888, %v889
    %v891 = vand.u32 %v890, 4294901760
    %892 = vmatmul.f32.gmra.mxu0 %v891
    %v893 = vpop.f32.mrf.mxu0
    %v894 = vadd.f32 %v854, %v893
    %895 = vdwg.mxu0
    %v896 = vand.u32 %v805, 4294901760
    %v897 = vsub.f32 %v805, %v896
    %v898 = vand.u32 %v897, 4294901760
    %v899 = vsub.f32 %v897, %v898
    %v900 = vand.u32 %v899, 4294901760
    %901 = vmatpush.msra.mxu0 %v900
    %v902 = vand.u32 %v804, 4294901760
    %v903 = vsub.f32 %v804, %v902
    %v904 = vand.u32 %v903, 4294901760
    %v905 = vsub.f32 %v903, %v904
    %v906 = vand.u32 %v905, 4294901760
    %907 = vmatpush.msra.mxu0 %v906
    %v908 = vand.u32 %v803, 4294901760
    %v909 = vsub.f32 %v803, %v908
    %v910 = vand.u32 %v909, 4294901760
    %v911 = vsub.f32 %v909, %v910
    %v912 = vand.u32 %v911, 4294901760
    %913 = vmatpush.msra.mxu0 %v912
    %v914 = vand.u32 %v802, 4294901760
    %v915 = vsub.f32 %v802, %v914
    %v916 = vand.u32 %v915, 4294901760
    %v917 = vsub.f32 %v915, %v916
    %v918 = vand.u32 %v917, 4294901760
    %919 = vmatpush.msra.mxu0 %v918
    %v920 = vand.u32 %v801, 4294901760
    %v921 = vsub.f32 %v801, %v920
    %v922 = vand.u32 %v921, 4294901760
    %v923 = vsub.f32 %v921, %v922
    %v924 = vand.u32 %v923, 4294901760
    %925 = vmatpush.msra.mxu0 %v924
    %v926 = vand.u32 %v800, 4294901760
    %v927 = vsub.f32 %v800, %v926
    %v928 = vand.u32 %v927, 4294901760
    %v929 = vsub.f32 %v927, %v928
    %v930 = vand.u32 %v929, 4294901760
    %931 = vmatpush.msra.mxu0 %v930
    %v932 = vand.u32 %v799, 4294901760
    %v933 = vsub.f32 %v799, %v932
    %v934 = vand.u32 %v933, 4294901760
    %v935 = vsub.f32 %v933, %v934
    %v936 = vand.u32 %v935, 4294901760
    %937 = vmatpush.msra.mxu0 %v936
    %v938 = vand.u32 %v798, 4294901760
    %v939 = vsub.f32 %v798, %v938
    %v940 = vand.u32 %v939, 4294901760
    %v941 = vsub.f32 %v939, %v940
    %v942 = vand.u32 %v941, 4294901760
    %943 = vmatpush.msra.mxu0 %v942
    %v944 = vand.u32 %v797, 4294901760
    %v945 = vsub.f32 %v797, %v944
    %v946 = vand.u32 %v945, 4294901760
    %v947 = vsub.f32 %v945, %v946
    %v948 = vand.u32 %v947, 4294901760
    %949 = vmatpush.msra.mxu0 %v948
    %v950 = vand.u32 %v796, 4294901760
    %v951 = vsub.f32 %v796, %v950
    %v952 = vand.u32 %v951, 4294901760
    %v953 = vsub.f32 %v951, %v952
    %v954 = vand.u32 %v953, 4294901760
    %955 = vmatpush.msra.mxu0 %v954
    %v956 = vand.u32 %v795, 4294901760
    %v957 = vsub.f32 %v795, %v956
    %v958 = vand.u32 %v957, 4294901760
    %v959 = vsub.f32 %v957, %v958
    %v960 = vand.u32 %v959, 4294901760
    %961 = vmatpush.msra.mxu0 %v960
    %v962 = vand.u32 %v794, 4294901760
    %v963 = vsub.f32 %v794, %v962
    %v964 = vand.u32 %v963, 4294901760
    %v965 = vsub.f32 %v963, %v964
    %v966 = vand.u32 %v965, 4294901760
    %967 = vmatpush.msra.mxu0 %v966
    %v968 = vand.u32 %v793, 4294901760
    %v969 = vsub.f32 %v793, %v968
    %v970 = vand.u32 %v969, 4294901760
    %v971 = vsub.f32 %v969, %v970
    %v972 = vand.u32 %v971, 4294901760
    %973 = vmatpush.msra.mxu0 %v972
    %v974 = vand.u32 %v792, 4294901760
    %v975 = vsub.f32 %v792, %v974
    %v976 = vand.u32 %v975, 4294901760
    %v977 = vsub.f32 %v975, %v976
    %v978 = vand.u32 %v977, 4294901760
    %979 = vmatpush.msra.mxu0 %v978
    %v980 = vand.u32 %v791, 4294901760
    %v981 = vsub.f32 %v791, %v980
    %v982 = vand.u32 %v981, 4294901760
    %v983 = vsub.f32 %v981, %v982
    %v984 = vand.u32 %v983, 4294901760
    %985 = vmatpush.msra.mxu0 %v984
    %v986 = vand.u32 %v790, 4294901760
    %v987 = vsub.f32 %v790, %v986
    %v988 = vand.u32 %v987, 4294901760
    %v989 = vsub.f32 %v987, %v988
    %v990 = vand.u32 %v989, 4294901760
    %991 = vmatpush.msra.mxu0 %v990
    %v992 = vand.u32 %v786, 4294901760
    %993 = vmatmul.f32.gmra.mxu0 %v992
    %v994 = vpop.f32.mrf.mxu0
    %v995 = vadd.f32 %v894, %v994
    %996 = vdwg.mxu0
    %v997 = vand.u32 %v805, 4294901760
    %v998 = vsub.f32 %v805, %v997
    %999 = vmatpush.msra.mxu0 %v998
    %v1000 = vand.u32 %v804, 4294901760
    %v1001 = vsub.f32 %v804, %v1000
    %1002 = vmatpush.msra.mxu0 %v1001
    %v1003 = vand.u32 %v803, 4294901760
    %v1004 = vsub.f32 %v803, %v1003
    %1005 = vmatpush.msra.mxu0 %v1004
    %v1006 = vand.u32 %v802, 4294901760
    %v1007 = vsub.f32 %v802, %v1006
    %1008 = vmatpush.msra.mxu0 %v1007
    %v1009 = vand.u32 %v801, 4294901760
    %v1010 = vsub.f32 %v801, %v1009
    %1011 = vmatpush.msra.mxu0 %v1010
    %v1012 = vand.u32 %v800, 4294901760
    %v1013 = vsub.f32 %v800, %v1012
    %1014 = vmatpush.msra.mxu0 %v1013
    %v1015 = vand.u32 %v799, 4294901760
    %v1016 = vsub.f32 %v799, %v1015
    %1017 = vmatpush.msra.mxu0 %v1016
    %v1018 = vand.u32 %v798, 4294901760
    %v1019 = vsub.f32 %v798, %v1018
    %1020 = vmatpush.msra.mxu0 %v1019
    %v1021 = vand.u32 %v797, 4294901760
    %v1022 = vsub.f32 %v797, %v1021
    %1023 = vmatpush.msra.mxu0 %v1022
    %v1024 = vand.u32 %v796, 4294901760
    %v1025 = vsub.f32 %v796, %v1024
    %1026 = vmatpush.msra.mxu0 %v1025
    %v1027 = vand.u32 %v795, 4294901760
    %v1028 = vsub.f32 %v795, %v1027
    %1029 = vmatpush.msra.mxu0 %v1028
    %v1030 = vand.u32 %v794, 4294901760
    %v1031 = vsub.f32 %v794, %v1030
    %1032 = vmatpush.msra.mxu0 %v1031
    %v1033 = vand.u32 %v793, 4294901760
    %v1034 = vsub.f32 %v793, %v1033
    %1035 = vmatpush.msra.mxu0 %v1034
    %v1036 = vand.u32 %v792, 4294901760
    %v1037 = vsub.f32 %v792, %v1036
    %1038 = vmatpush.msra.mxu0 %v1037
    %v1039 = vand.u32 %v791, 4294901760
    %v1040 = vsub.f32 %v791, %v1039
    %1041 = vmatpush.msra.mxu0 %v1040
    %v1042 = vand.u32 %v790, 4294901760
    %v1043 = vsub.f32 %v790, %v1042
    %1044 = vmatpush.msra.mxu0 %v1043
    %v1045 = vand.u32 %v786, 4294901760
    %v1046 = vsub.f32 %v786, %v1045
    %1047 = vmatmul.f32.gmra.mxu0 %v1046
    %v1048 = vpop.f32.mrf.mxu0
    %v1049 = vadd.f32 %v995, %v1048
    %1050 = vdwg.mxu0
    %v1051 = vand.u32 %v805, 4294901760
    %1052 = vmatpush.msra.mxu0 %v1051
    %v1053 = vand.u32 %v804, 4294901760
    %1054 = vmatpush.msra.mxu0 %v1053
    %v1055 = vand.u32 %v803, 4294901760
    %1056 = vmatpush.msra.mxu0 %v1055
    %v1057 = vand.u32 %v802, 4294901760
    %1058 = vmatpush.msra.mxu0 %v1057
    %v1059 = vand.u32 %v801, 4294901760
    %1060 = vmatpush.msra.mxu0 %v1059
    %v1061 = vand.u32 %v800, 4294901760
    %1062 = vmatpush.msra.mxu0 %v1061
    %v1063 = vand.u32 %v799, 4294901760
    %1064 = vmatpush.msra.mxu0 %v1063
    %v1065 = vand.u32 %v798, 4294901760
    %1066 = vmatpush.msra.mxu0 %v1065
    %v1067 = vand.u32 %v797, 4294901760
    %1068 = vmatpush.msra.mxu0 %v1067
    %v1069 = vand.u32 %v796, 4294901760
    %1070 = vmatpush.msra.mxu0 %v1069
    %v1071 = vand.u32 %v795, 4294901760
    %1072 = vmatpush.msra.mxu0 %v1071
    %v1073 = vand.u32 %v794, 4294901760
    %1074 = vmatpush.msra.mxu0 %v1073
    %v1075 = vand.u32 %v793, 4294901760
    %1076 = vmatpush.msra.mxu0 %v1075
    %v1077 = vand.u32 %v792, 4294901760
    %1078 = vmatpush.msra.mxu0 %v1077
    %v1079 = vand.u32 %v791, 4294901760
    %1080 = vmatpush.msra.mxu0 %v1079
    %v1081 = vand.u32 %v790, 4294901760
    %1082 = vmatpush.msra.mxu0 %v1081
    %v1083 = vand.u32 %v786, 4294901760
    %v1084 = vsub.f32 %v786, %v1083
    %v1085 = vand.u32 %v1084, 4294901760
    %1086 = vmatmul.f32.gmra.mxu0 %v1085
    %v1087 = vpop.f32.mrf.mxu0
    %v1088 = vadd.f32 %v1049, %v1087
    %1089 = vdwg.mxu0
    %v1090 = vand.u32 %v805, 4294901760
    %v1091 = vsub.f32 %v805, %v1090
    %v1092 = vand.u32 %v1091, 4294901760
    %1093 = vmatpush.msra.mxu0 %v1092
    %v1094 = vand.u32 %v804, 4294901760
    %v1095 = vsub.f32 %v804, %v1094
    %v1096 = vand.u32 %v1095, 4294901760
    %1097 = vmatpush.msra.mxu0 %v1096
    %v1098 = vand.u32 %v803, 4294901760
    %v1099 = vsub.f32 %v803, %v1098
    %v1100 = vand.u32 %v1099, 4294901760
    %1101 = vmatpush.msra.mxu0 %v1100
    %v1102 = vand.u32 %v802, 4294901760
    %v1103 = vsub.f32 %v802, %v1102
    %v1104 = vand.u32 %v1103, 4294901760
    %1105 = vmatpush.msra.mxu0 %v1104
    %v1106 = vand.u32 %v801, 4294901760
    %v1107 = vsub.f32 %v801, %v1106
    %v1108 = vand.u32 %v1107, 4294901760
    %1109 = vmatpush.msra.mxu0 %v1108
    %v1110 = vand.u32 %v800, 4294901760
    %v1111 = vsub.f32 %v800, %v1110
    %v1112 = vand.u32 %v1111, 4294901760
    %1113 = vmatpush.msra.mxu0 %v1112
    %v1114 = vand.u32 %v799, 4294901760
    %v1115 = vsub.f32 %v799, %v1114
    %v1116 = vand.u32 %v1115, 4294901760
    %1117 = vmatpush.msra.mxu0 %v1116
    %v1118 = vand.u32 %v798, 4294901760
    %v1119 = vsub.f32 %v798, %v1118
    %v1120 = vand.u32 %v1119, 4294901760
    %1121 = vmatpush.msra.mxu0 %v1120
    %v1122 = vand.u32 %v797, 4294901760
    %v1123 = vsub.f32 %v797, %v1122
    %v1124 = vand.u32 %v1123, 4294901760
    %1125 = vmatpush.msra.mxu0 %v1124
    %v1126 = vand.u32 %v796, 4294901760
    %v1127 = vsub.f32 %v796, %v1126
    %v1128 = vand.u32 %v1127, 4294901760
    %1129 = vmatpush.msra.mxu0 %v1128
    %v1130 = vand.u32 %v795, 4294901760
    %v1131 = vsub.f32 %v795, %v1130
    %v1132 = vand.u32 %v1131, 4294901760
    %1133 = vmatpush.msra.mxu0 %v1132
    %v1134 = vand.u32 %v794, 4294901760
    %v1135 = vsub.f32 %v794, %v1134
    %v1136 = vand.u32 %v1135, 4294901760
    %1137 = vmatpush.msra.mxu0 %v1136
    %v1138 = vand.u32 %v793, 4294901760
    %v1139 = vsub.f32 %v793, %v1138
    %v1140 = vand.u32 %v1139, 4294901760
    %1141 = vmatpush.msra.mxu0 %v1140
    %v1142 = vand.u32 %v792, 4294901760
    %v1143 = vsub.f32 %v792, %v1142
    %v1144 = vand.u32 %v1143, 4294901760
    %1145 = vmatpush.msra.mxu0 %v1144
    %v1146 = vand.u32 %v791, 4294901760
    %v1147 = vsub.f32 %v791, %v1146
    %v1148 = vand.u32 %v1147, 4294901760
    %1149 = vmatpush.msra.mxu0 %v1148
    %v1150 = vand.u32 %v790, 4294901760
    %v1151 = vsub.f32 %v790, %v1150
    %v1152 = vand.u32 %v1151, 4294901760
    %1153 = vmatpush.msra.mxu0 %v1152
    %v1154 = vand.u32 %v786, 4294901760
    %1155 = vmatmul.f32.gmra.mxu0 %v1154
    %v1156 = vpop.f32.mrf.mxu0
    %v1157 = vadd.f32 %v1088, %v1156
    %1158 = vdwg.mxu0
    %v1159 = vand.u32 %v805, 4294901760
    %1160 = vmatpush.msra.mxu0 %v1159
    %v1161 = vand.u32 %v804, 4294901760
    %1162 = vmatpush.msra.mxu0 %v1161
    %v1163 = vand.u32 %v803, 4294901760
    %1164 = vmatpush.msra.mxu0 %v1163
    %v1165 = vand.u32 %v802, 4294901760
    %1166 = vmatpush.msra.mxu0 %v1165
    %v1167 = vand.u32 %v801, 4294901760
    %1168 = vmatpush.msra.mxu0 %v1167
    %v1169 = vand.u32 %v800, 4294901760
    %1170 = vmatpush.msra.mxu0 %v1169
    %v1171 = vand.u32 %v799, 4294901760
    %1172 = vmatpush.msra.mxu0 %v1171
    %v1173 = vand.u32 %v798, 4294901760
    %1174 = vmatpush.msra.mxu0 %v1173
    %v1175 = vand.u32 %v797, 4294901760
    %1176 = vmatpush.msra.mxu0 %v1175
    %v1177 = vand.u32 %v796, 4294901760
    %1178 = vmatpush.msra.mxu0 %v1177
    %v1179 = vand.u32 %v795, 4294901760
    %1180 = vmatpush.msra.mxu0 %v1179
    %v1181 = vand.u32 %v794, 4294901760
    %1182 = vmatpush.msra.mxu0 %v1181
    %v1183 = vand.u32 %v793, 4294901760
    %1184 = vmatpush.msra.mxu0 %v1183
    %v1185 = vand.u32 %v792, 4294901760
    %1186 = vmatpush.msra.mxu0 %v1185
    %v1187 = vand.u32 %v791, 4294901760
    %1188 = vmatpush.msra.mxu0 %v1187
    %v1189 = vand.u32 %v790, 4294901760
    %1190 = vmatpush.msra.mxu0 %v1189
    %v1191 = vand.u32 %v786, 4294901760
    %1192 = vmatmul.f32.gmra.mxu0 %v1191
    %v1193 = vpop.f32.mrf.mxu0
    %v1194 = vadd.f32 %v1157, %v1193
    %1195 = vdwg.mxu0
    %v1196 = vand.u32 %v821, 4294901760
    %1197 = vmatpush.msra.mxu0 %v1196
    %v1198 = vand.u32 %v820, 4294901760
    %1199 = vmatpush.msra.mxu0 %v1198
    %v1200 = vand.u32 %v819, 4294901760
    %1201 = vmatpush.msra.mxu0 %v1200
    %v1202 = vand.u32 %v818, 4294901760
    %1203 = vmatpush.msra.mxu0 %v1202
    %v1204 = vand.u32 %v817, 4294901760
    %1205 = vmatpush.msra.mxu0 %v1204
    %v1206 = vand.u32 %v816, 4294901760
    %1207 = vmatpush.msra.mxu0 %v1206
    %v1208 = vand.u32 %v815, 4294901760
    %1209 = vmatpush.msra.mxu0 %v1208
    %v1210 = vand.u32 %v814, 4294901760
    %1211 = vmatpush.msra.mxu0 %v1210
    %v1212 = vand.u32 %v813, 4294901760
    %1213 = vmatpush.msra.mxu0 %v1212
    %v1214 = vand.u32 %v812, 4294901760
    %1215 = vmatpush.msra.mxu0 %v1214
    %v1216 = vand.u32 %v811, 4294901760
    %1217 = vmatpush.msra.mxu0 %v1216
    %v1218 = vand.u32 %v810, 4294901760
    %1219 = vmatpush.msra.mxu0 %v1218
    %v1220 = vand.u32 %v809, 4294901760
    %1221 = vmatpush.msra.mxu0 %v1220
    %v1222 = vand.u32 %v808, 4294901760
    %1223 = vmatpush.msra.mxu0 %v1222
    %v1224 = vand.u32 %v807, 4294901760
    %1225 = vmatpush.msra.mxu0 %v1224
    %v1226 = vand.u32 %v806, 4294901760
    %1227 = vmatpush.msra.mxu0 %v1226
    %v1228 = vand.u32 %v787, 4294901760
    %v1229 = vsub.f32 %v787, %v1228
    %v1230 = vand.u32 %v1229, 4294901760
    %v1231 = vsub.f32 %v1229, %v1230
    %v1232 = vand.u32 %v1231, 4294901760
    %1233 = vmatmul.f32.gmra.mxu0 %v1232
    %v1234 = vpop.f32.mrf.mxu0
    %v1235 = vadd.f32 %v1194, %v1234
    %1236 = vdwg.mxu0
    %v1237 = vand.u32 %v821, 4294901760
    %v1238 = vsub.f32 %v821, %v1237
    %v1239 = vand.u32 %v1238, 4294901760
    %v1240 = vsub.f32 %v1238, %v1239
    %v1241 = vand.u32 %v1240, 4294901760
    %1242 = vmatpush.msra.mxu0 %v1241
    %v1243 = vand.u32 %v820, 4294901760
    %v1244 = vsub.f32 %v820, %v1243
    %v1245 = vand.u32 %v1244, 4294901760
    %v1246 = vsub.f32 %v1244, %v1245
    %v1247 = vand.u32 %v1246, 4294901760
    %1248 = vmatpush.msra.mxu0 %v1247
    %v1249 = vand.u32 %v819, 4294901760
    %v1250 = vsub.f32 %v819, %v1249
    %v1251 = vand.u32 %v1250, 4294901760
    %v1252 = vsub.f32 %v1250, %v1251
    %v1253 = vand.u32 %v1252, 4294901760
    %1254 = vmatpush.msra.mxu0 %v1253
    %v1255 = vand.u32 %v818, 4294901760
    %v1256 = vsub.f32 %v818, %v1255
    %v1257 = vand.u32 %v1256, 4294901760
    %v1258 = vsub.f32 %v1256, %v1257
    %v1259 = vand.u32 %v1258, 4294901760
    %1260 = vmatpush.msra.mxu0 %v1259
    %v1261 = vand.u32 %v817, 4294901760
    %v1262 = vsub.f32 %v817, %v1261
    %v1263 = vand.u32 %v1262, 4294901760
    %v1264 = vsub.f32 %v1262, %v1263
    %v1265 = vand.u32 %v1264, 4294901760
    %1266 = vmatpush.msra.mxu0 %v1265
    %v1267 = vand.u32 %v816, 4294901760
    %v1268 = vsub.f32 %v816, %v1267
    %v1269 = vand.u32 %v1268, 4294901760
    %v1270 = vsub.f32 %v1268, %v1269
    %v1271 = vand.u32 %v1270, 4294901760
    %1272 = vmatpush.msra.mxu0 %v1271
    %v1273 = vand.u32 %v815, 4294901760
    %v1274 = vsub.f32 %v815, %v1273
    %v1275 = vand.u32 %v1274, 4294901760
    %v1276 = vsub.f32 %v1274, %v1275
    %v1277 = vand.u32 %v1276, 4294901760
    %1278 = vmatpush.msra.mxu0 %v1277
    %v1279 = vand.u32 %v814, 4294901760
    %v1280 = vsub.f32 %v814, %v1279
    %v1281 = vand.u32 %v1280, 4294901760
    %v1282 = vsub.f32 %v1280, %v1281
    %v1283 = vand.u32 %v1282, 4294901760
    %1284 = vmatpush.msra.mxu0 %v1283
    %v1285 = vand.u32 %v813, 4294901760
    %v1286 = vsub.f32 %v813, %v1285
    %v1287 = vand.u32 %v1286, 4294901760
    %v1288 = vsub.f32 %v1286, %v1287
    %v1289 = vand.u32 %v1288, 4294901760
    %1290 = vmatpush.msra.mxu0 %v1289
    %v1291 = vand.u32 %v812, 4294901760
    %v1292 = vsub.f32 %v812, %v1291
    %v1293 = vand.u32 %v1292, 4294901760
    %v1294 = vsub.f32 %v1292, %v1293
    %v1295 = vand.u32 %v1294, 4294901760
    %1296 = vmatpush.msra.mxu0 %v1295
    %v1297 = vand.u32 %v811, 4294901760
    %v1298 = vsub.f32 %v811, %v1297
    %v1299 = vand.u32 %v1298, 4294901760
    %v1300 = vsub.f32 %v1298, %v1299
    %v1301 = vand.u32 %v1300, 4294901760
    %1302 = vmatpush.msra.mxu0 %v1301
    %v1303 = vand.u32 %v810, 4294901760
    %v1304 = vsub.f32 %v810, %v1303
    %v1305 = vand.u32 %v1304, 4294901760
    %v1306 = vsub.f32 %v1304, %v1305
    %v1307 = vand.u32 %v1306, 4294901760
    %1308 = vmatpush.msra.mxu0 %v1307
    %v1309 = vand.u32 %v809, 4294901760
    %v1310 = vsub.f32 %v809, %v1309
    %v1311 = vand.u32 %v1310, 4294901760
    %v1312 = vsub.f32 %v1310, %v1311
    %v1313 = vand.u32 %v1312, 4294901760
    %1314 = vmatpush.msra.mxu0 %v1313
    %v1315 = vand.u32 %v808, 4294901760
    %v1316 = vsub.f32 %v808, %v1315
    %v1317 = vand.u32 %v1316, 4294901760
    %v1318 = vsub.f32 %v1316, %v1317
    %v1319 = vand.u32 %v1318, 4294901760
    %1320 = vmatpush.msra.mxu0 %v1319
    %v1321 = vand.u32 %v807, 4294901760
    %v1322 = vsub.f32 %v807, %v1321
    %v1323 = vand.u32 %v1322, 4294901760
    %v1324 = vsub.f32 %v1322, %v1323
    %v1325 = vand.u32 %v1324, 4294901760
    %1326 = vmatpush.msra.mxu0 %v1325
    %v1327 = vand.u32 %v806, 4294901760
    %v1328 = vsub.f32 %v806, %v1327
    %v1329 = vand.u32 %v1328, 4294901760
    %v1330 = vsub.f32 %v1328, %v1329
    %v1331 = vand.u32 %v1330, 4294901760
    %1332 = vmatpush.msra.mxu0 %v1331
    %v1333 = vand.u32 %v787, 4294901760
    %1334 = vmatmul.f32.gmra.mxu0 %v1333
    %v1335 = vpop.f32.mrf.mxu0
    %v1336 = vadd.f32 %v1235, %v1335
    %1337 = vdwg.mxu0
    %v1338 = vand.u32 %v821, 4294901760
    %v1339 = vsub.f32 %v821, %v1338
    %1340 = vmatpush.msra.mxu0 %v1339
    %v1341 = vand.u32 %v820, 4294901760
    %v1342 = vsub.f32 %v820, %v1341
    %1343 = vmatpush.msra.mxu0 %v1342
    %v1344 = vand.u32 %v819, 4294901760
    %v1345 = vsub.f32 %v819, %v1344
    %1346 = vmatpush.msra.mxu0 %v1345
    %v1347 = vand.u32 %v818, 4294901760
    %v1348 = vsub.f32 %v818, %v1347
    %1349 = vmatpush.msra.mxu0 %v1348
    %v1350 = vand.u32 %v817, 4294901760
    %v1351 = vsub.f32 %v817, %v1350
    %1352 = vmatpush.msra.mxu0 %v1351
    %v1353 = vand.u32 %v816, 4294901760
    %v1354 = vsub.f32 %v816, %v1353
    %1355 = vmatpush.msra.mxu0 %v1354
    %v1356 = vand.u32 %v815, 4294901760
    %v1357 = vsub.f32 %v815, %v1356
    %1358 = vmatpush.msra.mxu0 %v1357
    %v1359 = vand.u32 %v814, 4294901760
    %v1360 = vsub.f32 %v814, %v1359
    %1361 = vmatpush.msra.mxu0 %v1360
    %v1362 = vand.u32 %v813, 4294901760
    %v1363 = vsub.f32 %v813, %v1362
    %1364 = vmatpush.msra.mxu0 %v1363
    %v1365 = vand.u32 %v812, 4294901760
    %v1366 = vsub.f32 %v812, %v1365
    %1367 = vmatpush.msra.mxu0 %v1366
    %v1368 = vand.u32 %v811, 4294901760
    %v1369 = vsub.f32 %v811, %v1368
    %1370 = vmatpush.msra.mxu0 %v1369
    %v1371 = vand.u32 %v810, 4294901760
    %v1372 = vsub.f32 %v810, %v1371
    %1373 = vmatpush.msra.mxu0 %v1372
    %v1374 = vand.u32 %v809, 4294901760
    %v1375 = vsub.f32 %v809, %v1374
    %1376 = vmatpush.msra.mxu0 %v1375
    %v1377 = vand.u32 %v808, 4294901760
    %v1378 = vsub.f32 %v808, %v1377
    %1379 = vmatpush.msra.mxu0 %v1378
    %v1380 = vand.u32 %v807, 4294901760
    %v1381 = vsub.f32 %v807, %v1380
    %1382 = vmatpush.msra.mxu0 %v1381
    %v1383 = vand.u32 %v806, 4294901760
    %v1384 = vsub.f32 %v806, %v1383
    %1385 = vmatpush.msra.mxu0 %v1384
    %v1386 = vand.u32 %v787, 4294901760
    %v1387 = vsub.f32 %v787, %v1386
    %1388 = vmatmul.f32.gmra.mxu0 %v1387
    %v1389 = vpop.f32.mrf.mxu0
    %v1390 = vadd.f32 %v1336, %v1389
    %1391 = vdwg.mxu0
    %v1392 = vand.u32 %v821, 4294901760
    %1393 = vmatpush.msra.mxu0 %v1392
    %v1394 = vand.u32 %v820, 4294901760
    %1395 = vmatpush.msra.mxu0 %v1394
    %v1396 = vand.u32 %v819, 4294901760
    %1397 = vmatpush.msra.mxu0 %v1396
    %v1398 = vand.u32 %v818, 4294901760
    %1399 = vmatpush.msra.mxu0 %v1398
    %v1400 = vand.u32 %v817, 4294901760
    %1401 = vmatpush.msra.mxu0 %v1400
    %v1402 = vand.u32 %v816, 4294901760
    %1403 = vmatpush.msra.mxu0 %v1402
    %v1404 = vand.u32 %v815, 4294901760
    %1405 = vmatpush.msra.mxu0 %v1404
    %v1406 = vand.u32 %v814, 4294901760
    %1407 = vmatpush.msra.mxu0 %v1406
    %v1408 = vand.u32 %v813, 4294901760
    %1409 = vmatpush.msra.mxu0 %v1408
    %v1410 = vand.u32 %v812, 4294901760
    %1411 = vmatpush.msra.mxu0 %v1410
    %v1412 = vand.u32 %v811, 4294901760
    %1413 = vmatpush.msra.mxu0 %v1412
    %v1414 = vand.u32 %v810, 4294901760
    %1415 = vmatpush.msra.mxu0 %v1414
    %v1416 = vand.u32 %v809, 4294901760
    %1417 = vmatpush.msra.mxu0 %v1416
    %v1418 = vand.u32 %v808, 4294901760
    %1419 = vmatpush.msra.mxu0 %v1418
    %v1420 = vand.u32 %v807, 4294901760
    %1421 = vmatpush.msra.mxu0 %v1420
    %v1422 = vand.u32 %v806, 4294901760
    %1423 = vmatpush.msra.mxu0 %v1422
    %v1424 = vand.u32 %v787, 4294901760
    %v1425 = vsub.f32 %v787, %v1424
    %v1426 = vand.u32 %v1425, 4294901760
    %1427 = vmatmul.f32.gmra.mxu0 %v1426
    %v1428 = vpop.f32.mrf.mxu0
    %v1429 = vadd.f32 %v1390, %v1428
    %1430 = vdwg.mxu0
    %v1431 = vand.u32 %v821, 4294901760
    %v1432 = vsub.f32 %v821, %v1431
    %v1433 = vand.u32 %v1432, 4294901760
    %1434 = vmatpush.msra.mxu0 %v1433
    %v1435 = vand.u32 %v820, 4294901760
    %v1436 = vsub.f32 %v820, %v1435
    %v1437 = vand.u32 %v1436, 4294901760
    %1438 = vmatpush.msra.mxu0 %v1437
    %v1439 = vand.u32 %v819, 4294901760
    %v1440 = vsub.f32 %v819, %v1439
    %v1441 = vand.u32 %v1440, 4294901760
    %1442 = vmatpush.msra.mxu0 %v1441
    %v1443 = vand.u32 %v818, 4294901760
    %v1444 = vsub.f32 %v818, %v1443
    %v1445 = vand.u32 %v1444, 4294901760
    %1446 = vmatpush.msra.mxu0 %v1445
    %v1447 = vand.u32 %v817, 4294901760
    %v1448 = vsub.f32 %v817, %v1447
    %v1449 = vand.u32 %v1448, 4294901760
    %1450 = vmatpush.msra.mxu0 %v1449
    %v1451 = vand.u32 %v816, 4294901760
    %v1452 = vsub.f32 %v816, %v1451
    %v1453 = vand.u32 %v1452, 4294901760
    %1454 = vmatpush.msra.mxu0 %v1453
    %v1455 = vand.u32 %v815, 4294901760
    %v1456 = vsub.f32 %v815, %v1455
    %v1457 = vand.u32 %v1456, 4294901760
    %1458 = vmatpush.msra.mxu0 %v1457
    %v1459 = vand.u32 %v814, 4294901760
    %v1460 = vsub.f32 %v814, %v1459
    %v1461 = vand.u32 %v1460, 4294901760
    %1462 = vmatpush.msra.mxu0 %v1461
    %v1463 = vand.u32 %v813, 4294901760
    %v1464 = vsub.f32 %v813, %v1463
    %v1465 = vand.u32 %v1464, 4294901760
    %1466 = vmatpush.msra.mxu0 %v1465
    %v1467 = vand.u32 %v812, 4294901760
    %v1468 = vsub.f32 %v812, %v1467
    %v1469 = vand.u32 %v1468, 4294901760
    %1470 = vmatpush.msra.mxu0 %v1469
    %v1471 = vand.u32 %v811, 4294901760
    %v1472 = vsub.f32 %v811, %v1471
    %v1473 = vand.u32 %v1472, 4294901760
    %1474 = vmatpush.msra.mxu0 %v1473
    %v1475 = vand.u32 %v810, 4294901760
    %v1476 = vsub.f32 %v810, %v1475
    %v1477 = vand.u32 %v1476, 4294901760
    %1478 = vmatpush.msra.mxu0 %v1477
    %v1479 = vand.u32 %v809, 4294901760
    %v1480 = vsub.f32 %v809, %v1479
    %v1481 = vand.u32 %v1480, 4294901760
    %1482 = vmatpush.msra.mxu0 %v1481
    %v1483 = vand.u32 %v808, 4294901760
    %v1484 = vsub.f32 %v808, %v1483
    %v1485 = vand.u32 %v1484, 4294901760
    %1486 = vmatpush.msra.mxu0 %v1485
    %v1487 = vand.u32 %v807, 4294901760
    %v1488 = vsub.f32 %v807, %v1487
    %v1489 = vand.u32 %v1488, 4294901760
    %1490 = vmatpush.msra.mxu0 %v1489
    %v1491 = vand.u32 %v806, 4294901760
    %v1492 = vsub.f32 %v806, %v1491
    %v1493 = vand.u32 %v1492, 4294901760
    %1494 = vmatpush.msra.mxu0 %v1493
    %v1495 = vand.u32 %v787, 4294901760
    %1496 = vmatmul.f32.gmra.mxu0 %v1495
    %v1497 = vpop.f32.mrf.mxu0
    %v1498 = vadd.f32 %v1429, %v1497
    %1499 = vdwg.mxu0
    %v1500 = vand.u32 %v821, 4294901760
    %1501 = vmatpush.msra.mxu0 %v1500
    %v1502 = vand.u32 %v820, 4294901760
    %1503 = vmatpush.msra.mxu0 %v1502
    %v1504 = vand.u32 %v819, 4294901760
    %1505 = vmatpush.msra.mxu0 %v1504
    %v1506 = vand.u32 %v818, 4294901760
    %1507 = vmatpush.msra.mxu0 %v1506
    %v1508 = vand.u32 %v817, 4294901760
    %1509 = vmatpush.msra.mxu0 %v1508
    %v1510 = vand.u32 %v816, 4294901760
    %1511 = vmatpush.msra.mxu0 %v1510
    %v1512 = vand.u32 %v815, 4294901760
    %1513 = vmatpush.msra.mxu0 %v1512
    %v1514 = vand.u32 %v814, 4294901760
    %1515 = vmatpush.msra.mxu0 %v1514
    %v1516 = vand.u32 %v813, 4294901760
    %1517 = vmatpush.msra.mxu0 %v1516
    %v1518 = vand.u32 %v812, 4294901760
    %1519 = vmatpush.msra.mxu0 %v1518
    %v1520 = vand.u32 %v811, 4294901760
    %1521 = vmatpush.msra.mxu0 %v1520
    %v1522 = vand.u32 %v810, 4294901760
    %1523 = vmatpush.msra.mxu0 %v1522
    %v1524 = vand.u32 %v809, 4294901760
    %1525 = vmatpush.msra.mxu0 %v1524
    %v1526 = vand.u32 %v808, 4294901760
    %1527 = vmatpush.msra.mxu0 %v1526
    %v1528 = vand.u32 %v807, 4294901760
    %1529 = vmatpush.msra.mxu0 %v1528
    %v1530 = vand.u32 %v806, 4294901760
    %1531 = vmatpush.msra.mxu0 %v1530
    %v1532 = vand.u32 %v787, 4294901760
    %1533 = vmatmul.f32.gmra.mxu0 %v1532
    %v1534 = vpop.f32.mrf.mxu0
    %v1535 = vadd.f32 %v1498, %v1534
    %1536 = vdwg.mxu0
    %v1537 = vand.u32 %v837, 4294901760
    %1538 = vmatpush.msra.mxu0 %v1537
    %v1539 = vand.u32 %v836, 4294901760
    %1540 = vmatpush.msra.mxu0 %v1539
    %v1541 = vand.u32 %v835, 4294901760
    %1542 = vmatpush.msra.mxu0 %v1541
    %v1543 = vand.u32 %v834, 4294901760
    %1544 = vmatpush.msra.mxu0 %v1543
    %v1545 = vand.u32 %v833, 4294901760
    %1546 = vmatpush.msra.mxu0 %v1545
    %v1547 = vand.u32 %v832, 4294901760
    %1548 = vmatpush.msra.mxu0 %v1547
    %v1549 = vand.u32 %v831, 4294901760
    %1550 = vmatpush.msra.mxu0 %v1549
    %v1551 = vand.u32 %v830, 4294901760
    %1552 = vmatpush.msra.mxu0 %v1551
    %v1553 = vand.u32 %v829, 4294901760
    %1554 = vmatpush.msra.mxu0 %v1553
    %v1555 = vand.u32 %v828, 4294901760
    %1556 = vmatpush.msra.mxu0 %v1555
    %v1557 = vand.u32 %v827, 4294901760
    %1558 = vmatpush.msra.mxu0 %v1557
    %v1559 = vand.u32 %v826, 4294901760
    %1560 = vmatpush.msra.mxu0 %v1559
    %v1561 = vand.u32 %v825, 4294901760
    %1562 = vmatpush.msra.mxu0 %v1561
    %v1563 = vand.u32 %v824, 4294901760
    %1564 = vmatpush.msra.mxu0 %v1563
    %v1565 = vand.u32 %v823, 4294901760
    %1566 = vmatpush.msra.mxu0 %v1565
    %v1567 = vand.u32 %v822, 4294901760
    %1568 = vmatpush.msra.mxu0 %v1567
    %v1569 = vand.u32 %v788, 4294901760
    %v1570 = vsub.f32 %v788, %v1569
    %v1571 = vand.u32 %v1570, 4294901760
    %v1572 = vsub.f32 %v1570, %v1571
    %v1573 = vand.u32 %v1572, 4294901760
    %1574 = vmatmul.f32.gmra.mxu0 %v1573
    %v1575 = vpop.f32.mrf.mxu0
    %v1576 = vadd.f32 %v1535, %v1575
    %1577 = vdwg.mxu0
    %v1578 = vand.u32 %v837, 4294901760
    %v1579 = vsub.f32 %v837, %v1578
    %v1580 = vand.u32 %v1579, 4294901760
    %v1581 = vsub.f32 %v1579, %v1580
    %v1582 = vand.u32 %v1581, 4294901760
    %1583 = vmatpush.msra.mxu0 %v1582
    %v1584 = vand.u32 %v836, 4294901760
    %v1585 = vsub.f32 %v836, %v1584
    %v1586 = vand.u32 %v1585, 4294901760
    %v1587 = vsub.f32 %v1585, %v1586
    %v1588 = vand.u32 %v1587, 4294901760
    %1589 = vmatpush.msra.mxu0 %v1588
    %v1590 = vand.u32 %v835, 4294901760
    %v1591 = vsub.f32 %v835, %v1590
    %v1592 = vand.u32 %v1591, 4294901760
    %v1593 = vsub.f32 %v1591, %v1592
    %v1594 = vand.u32 %v1593, 4294901760
    %1595 = vmatpush.msra.mxu0 %v1594
    %v1596 = vand.u32 %v834, 4294901760
    %v1597 = vsub.f32 %v834, %v1596
    %v1598 = vand.u32 %v1597, 4294901760
    %v1599 = vsub.f32 %v1597, %v1598
    %v1600 = vand.u32 %v1599, 4294901760
    %1601 = vmatpush.msra.mxu0 %v1600
    %v1602 = vand.u32 %v833, 4294901760
    %v1603 = vsub.f32 %v833, %v1602
    %v1604 = vand.u32 %v1603, 4294901760
    %v1605 = vsub.f32 %v1603, %v1604
    %v1606 = vand.u32 %v1605, 4294901760
    %1607 = vmatpush.msra.mxu0 %v1606
    %v1608 = vand.u32 %v832, 4294901760
    %v1609 = vsub.f32 %v832, %v1608
    %v1610 = vand.u32 %v1609, 4294901760
    %v1611 = vsub.f32 %v1609, %v1610
    %v1612 = vand.u32 %v1611, 4294901760
    %1613 = vmatpush.msra.mxu0 %v1612
    %v1614 = vand.u32 %v831, 4294901760
    %v1615 = vsub.f32 %v831, %v1614
    %v1616 = vand.u32 %v1615, 4294901760
    %v1617 = vsub.f32 %v1615, %v1616
    %v1618 = vand.u32 %v1617, 4294901760
    %1619 = vmatpush.msra.mxu0 %v1618
    %v1620 = vand.u32 %v830, 4294901760
    %v1621 = vsub.f32 %v830, %v1620
    %v1622 = vand.u32 %v1621, 4294901760
    %v1623 = vsub.f32 %v1621, %v1622
    %v1624 = vand.u32 %v1623, 4294901760
    %1625 = vmatpush.msra.mxu0 %v1624
    %v1626 = vand.u32 %v829, 4294901760
    %v1627 = vsub.f32 %v829, %v1626
    %v1628 = vand.u32 %v1627, 4294901760
    %v1629 = vsub.f32 %v1627, %v1628
    %v1630 = vand.u32 %v1629, 4294901760
    %1631 = vmatpush.msra.mxu0 %v1630
    %v1632 = vand.u32 %v828, 4294901760
    %v1633 = vsub.f32 %v828, %v1632
    %v1634 = vand.u32 %v1633, 4294901760
    %v1635 = vsub.f32 %v1633, %v1634
    %v1636 = vand.u32 %v1635, 4294901760
    %1637 = vmatpush.msra.mxu0 %v1636
    %v1638 = vand.u32 %v827, 4294901760
    %v1639 = vsub.f32 %v827, %v1638
    %v1640 = vand.u32 %v1639, 4294901760
    %v1641 = vsub.f32 %v1639, %v1640
    %v1642 = vand.u32 %v1641, 4294901760
    %1643 = vmatpush.msra.mxu0 %v1642
    %v1644 = vand.u32 %v826, 4294901760
    %v1645 = vsub.f32 %v826, %v1644
    %v1646 = vand.u32 %v1645, 4294901760
    %v1647 = vsub.f32 %v1645, %v1646
    %v1648 = vand.u32 %v1647, 4294901760
    %1649 = vmatpush.msra.mxu0 %v1648
    %v1650 = vand.u32 %v825, 4294901760
    %v1651 = vsub.f32 %v825, %v1650
    %v1652 = vand.u32 %v1651, 4294901760
    %v1653 = vsub.f32 %v1651, %v1652
    %v1654 = vand.u32 %v1653, 4294901760
    %1655 = vmatpush.msra.mxu0 %v1654
    %v1656 = vand.u32 %v824, 4294901760
    %v1657 = vsub.f32 %v824, %v1656
    %v1658 = vand.u32 %v1657, 4294901760
    %v1659 = vsub.f32 %v1657, %v1658
    %v1660 = vand.u32 %v1659, 4294901760
    %1661 = vmatpush.msra.mxu0 %v1660
    %v1662 = vand.u32 %v823, 4294901760
    %v1663 = vsub.f32 %v823, %v1662
    %v1664 = vand.u32 %v1663, 4294901760
    %v1665 = vsub.f32 %v1663, %v1664
    %v1666 = vand.u32 %v1665, 4294901760
    %1667 = vmatpush.msra.mxu0 %v1666
    %v1668 = vand.u32 %v822, 4294901760
    %v1669 = vsub.f32 %v822, %v1668
    %v1670 = vand.u32 %v1669, 4294901760
    %v1671 = vsub.f32 %v1669, %v1670
    %v1672 = vand.u32 %v1671, 4294901760
    %1673 = vmatpush.msra.mxu0 %v1672
    %v1674 = vand.u32 %v788, 4294901760
    %1675 = vmatmul.f32.gmra.mxu0 %v1674
    %v1676 = vpop.f32.mrf.mxu0
    %v1677 = vadd.f32 %v1576, %v1676
    %1678 = vdwg.mxu0
    %v1679 = vand.u32 %v837, 4294901760
    %v1680 = vsub.f32 %v837, %v1679
    %1681 = vmatpush.msra.mxu0 %v1680
    %v1682 = vand.u32 %v836, 4294901760
    %v1683 = vsub.f32 %v836, %v1682
    %1684 = vmatpush.msra.mxu0 %v1683
    %v1685 = vand.u32 %v835, 4294901760
    %v1686 = vsub.f32 %v835, %v1685
    %1687 = vmatpush.msra.mxu0 %v1686
    %v1688 = vand.u32 %v834, 4294901760
    %v1689 = vsub.f32 %v834, %v1688
    %1690 = vmatpush.msra.mxu0 %v1689
    %v1691 = vand.u32 %v833, 4294901760
    %v1692 = vsub.f32 %v833, %v1691
    %1693 = vmatpush.msra.mxu0 %v1692
    %v1694 = vand.u32 %v832, 4294901760
    %v1695 = vsub.f32 %v832, %v1694
    %1696 = vmatpush.msra.mxu0 %v1695
    %v1697 = vand.u32 %v831, 4294901760
    %v1698 = vsub.f32 %v831, %v1697
    %1699 = vmatpush.msra.mxu0 %v1698
    %v1700 = vand.u32 %v830, 4294901760
    %v1701 = vsub.f32 %v830, %v1700
    %1702 = vmatpush.msra.mxu0 %v1701
    %v1703 = vand.u32 %v829, 4294901760
    %v1704 = vsub.f32 %v829, %v1703
    %1705 = vmatpush.msra.mxu0 %v1704
    %v1706 = vand.u32 %v828, 4294901760
    %v1707 = vsub.f32 %v828, %v1706
    %1708 = vmatpush.msra.mxu0 %v1707
    %v1709 = vand.u32 %v827, 4294901760
    %v1710 = vsub.f32 %v827, %v1709
    %1711 = vmatpush.msra.mxu0 %v1710
    %v1712 = vand.u32 %v826, 4294901760
    %v1713 = vsub.f32 %v826, %v1712
    %1714 = vmatpush.msra.mxu0 %v1713
    %v1715 = vand.u32 %v825, 4294901760
    %v1716 = vsub.f32 %v825, %v1715
    %1717 = vmatpush.msra.mxu0 %v1716
    %v1718 = vand.u32 %v824, 4294901760
    %v1719 = vsub.f32 %v824, %v1718
    %1720 = vmatpush.msra.mxu0 %v1719
    %v1721 = vand.u32 %v823, 4294901760
    %v1722 = vsub.f32 %v823, %v1721
    %1723 = vmatpush.msra.mxu0 %v1722
    %v1724 = vand.u32 %v822, 4294901760
    %v1725 = vsub.f32 %v822, %v1724
    %1726 = vmatpush.msra.mxu0 %v1725
    %v1727 = vand.u32 %v788, 4294901760
    %v1728 = vsub.f32 %v788, %v1727
    %1729 = vmatmul.f32.gmra.mxu0 %v1728
    %v1730 = vpop.f32.mrf.mxu0
    %v1731 = vadd.f32 %v1677, %v1730
    %1732 = vdwg.mxu0
    %v1733 = vand.u32 %v837, 4294901760
    %1734 = vmatpush.msra.mxu0 %v1733
    %v1735 = vand.u32 %v836, 4294901760
    %1736 = vmatpush.msra.mxu0 %v1735
    %v1737 = vand.u32 %v835, 4294901760
    %1738 = vmatpush.msra.mxu0 %v1737
    %v1739 = vand.u32 %v834, 4294901760
    %1740 = vmatpush.msra.mxu0 %v1739
    %v1741 = vand.u32 %v833, 4294901760
    %1742 = vmatpush.msra.mxu0 %v1741
    %v1743 = vand.u32 %v832, 4294901760
    %1744 = vmatpush.msra.mxu0 %v1743
    %v1745 = vand.u32 %v831, 4294901760
    %1746 = vmatpush.msra.mxu0 %v1745
    %v1747 = vand.u32 %v830, 4294901760
    %1748 = vmatpush.msra.mxu0 %v1747
    %v1749 = vand.u32 %v829, 4294901760
    %1750 = vmatpush.msra.mxu0 %v1749
    %v1751 = vand.u32 %v828, 4294901760
    %1752 = vmatpush.msra.mxu0 %v1751
    %v1753 = vand.u32 %v827, 4294901760
    %1754 = vmatpush.msra.mxu0 %v1753
    %v1755 = vand.u32 %v826, 4294901760
    %1756 = vmatpush.msra.mxu0 %v1755
    %v1757 = vand.u32 %v825, 4294901760
    %1758 = vmatpush.msra.mxu0 %v1757
    %v1759 = vand.u32 %v824, 4294901760
    %1760 = vmatpush.msra.mxu0 %v1759
    %v1761 = vand.u32 %v823, 4294901760
    %1762 = vmatpush.msra.mxu0 %v1761
    %v1763 = vand.u32 %v822, 4294901760
    %1764 = vmatpush.msra.mxu0 %v1763
    %v1765 = vand.u32 %v788, 4294901760
    %v1766 = vsub.f32 %v788, %v1765
    %v1767 = vand.u32 %v1766, 4294901760
    %1768 = vmatmul.f32.gmra.mxu0 %v1767
    %v1769 = vpop.f32.mrf.mxu0
    %v1770 = vadd.f32 %v1731, %v1769
    %1771 = vdwg.mxu0
    %v1772 = vand.u32 %v837, 4294901760
    %v1773 = vsub.f32 %v837, %v1772
    %v1774 = vand.u32 %v1773, 4294901760
    %1775 = vmatpush.msra.mxu0 %v1774
    %v1776 = vand.u32 %v836, 4294901760
    %v1777 = vsub.f32 %v836, %v1776
    %v1778 = vand.u32 %v1777, 4294901760
    %1779 = vmatpush.msra.mxu0 %v1778
    %v1780 = vand.u32 %v835, 4294901760
    %v1781 = vsub.f32 %v835, %v1780
    %v1782 = vand.u32 %v1781, 4294901760
    %1783 = vmatpush.msra.mxu0 %v1782
    %v1784 = vand.u32 %v834, 4294901760
    %v1785 = vsub.f32 %v834, %v1784
    %v1786 = vand.u32 %v1785, 4294901760
    %1787 = vmatpush.msra.mxu0 %v1786
    %v1788 = vand.u32 %v833, 4294901760
    %v1789 = vsub.f32 %v833, %v1788
    %v1790 = vand.u32 %v1789, 4294901760
    %1791 = vmatpush.msra.mxu0 %v1790
    %v1792 = vand.u32 %v832, 4294901760
    %v1793 = vsub.f32 %v832, %v1792
    %v1794 = vand.u32 %v1793, 4294901760
    %1795 = vmatpush.msra.mxu0 %v1794
    %v1796 = vand.u32 %v831, 4294901760
    %v1797 = vsub.f32 %v831, %v1796
    %v1798 = vand.u32 %v1797, 4294901760
    %1799 = vmatpush.msra.mxu0 %v1798
    %v1800 = vand.u32 %v830, 4294901760
    %v1801 = vsub.f32 %v830, %v1800
    %v1802 = vand.u32 %v1801, 4294901760
    %1803 = vmatpush.msra.mxu0 %v1802
    %v1804 = vand.u32 %v829, 4294901760
    %v1805 = vsub.f32 %v829, %v1804
    %v1806 = vand.u32 %v1805, 4294901760
    %1807 = vmatpush.msra.mxu0 %v1806
    %v1808 = vand.u32 %v828, 4294901760
    %v1809 = vsub.f32 %v828, %v1808
    %v1810 = vand.u32 %v1809, 4294901760
    %1811 = vmatpush.msra.mxu0 %v1810
    %v1812 = vand.u32 %v827, 4294901760
    %v1813 = vsub.f32 %v827, %v1812
    %v1814 = vand.u32 %v1813, 4294901760
    %1815 = vmatpush.msra.mxu0 %v1814
    %v1816 = vand.u32 %v826, 4294901760
    %v1817 = vsub.f32 %v826, %v1816
    %v1818 = vand.u32 %v1817, 4294901760
    %1819 = vmatpush.msra.mxu0 %v1818
    %v1820 = vand.u32 %v825, 4294901760
    %v1821 = vsub.f32 %v825, %v1820
    %v1822 = vand.u32 %v1821, 4294901760
    %1823 = vmatpush.msra.mxu0 %v1822
    %v1824 = vand.u32 %v824, 4294901760
    %v1825 = vsub.f32 %v824, %v1824
    %v1826 = vand.u32 %v1825, 4294901760
    %1827 = vmatpush.msra.mxu0 %v1826
    %v1828 = vand.u32 %v823, 4294901760
    %v1829 = vsub.f32 %v823, %v1828
    %v1830 = vand.u32 %v1829, 4294901760
    %1831 = vmatpush.msra.mxu0 %v1830
    %v1832 = vand.u32 %v822, 4294901760
    %v1833 = vsub.f32 %v822, %v1832
    %v1834 = vand.u32 %v1833, 4294901760
    %1835 = vmatpush.msra.mxu0 %v1834
    %v1836 = vand.u32 %v788, 4294901760
    %1837 = vmatmul.f32.gmra.mxu0 %v1836
    %v1838 = vpop.f32.mrf.mxu0
    %v1839 = vadd.f32 %v1770, %v1838
    %1840 = vdwg.mxu0
    %v1841 = vand.u32 %v837, 4294901760
    %1842 = vmatpush.msra.mxu0 %v1841
    %v1843 = vand.u32 %v836, 4294901760
    %1844 = vmatpush.msra.mxu0 %v1843
    %v1845 = vand.u32 %v835, 4294901760
    %1846 = vmatpush.msra.mxu0 %v1845
    %v1847 = vand.u32 %v834, 4294901760
    %1848 = vmatpush.msra.mxu0 %v1847
    %v1849 = vand.u32 %v833, 4294901760
    %1850 = vmatpush.msra.mxu0 %v1849
    %v1851 = vand.u32 %v832, 4294901760
    %1852 = vmatpush.msra.mxu0 %v1851
    %v1853 = vand.u32 %v831, 4294901760
    %1854 = vmatpush.msra.mxu0 %v1853
    %v1855 = vand.u32 %v830, 4294901760
    %1856 = vmatpush.msra.mxu0 %v1855
    %v1857 = vand.u32 %v829, 4294901760
    %1858 = vmatpush.msra.mxu0 %v1857
    %v1859 = vand.u32 %v828, 4294901760
    %1860 = vmatpush.msra.mxu0 %v1859
    %v1861 = vand.u32 %v827, 4294901760
    %1862 = vmatpush.msra.mxu0 %v1861
    %v1863 = vand.u32 %v826, 4294901760
    %1864 = vmatpush.msra.mxu0 %v1863
    %v1865 = vand.u32 %v825, 4294901760
    %1866 = vmatpush.msra.mxu0 %v1865
    %v1867 = vand.u32 %v824, 4294901760
    %1868 = vmatpush.msra.mxu0 %v1867
    %v1869 = vand.u32 %v823, 4294901760
    %1870 = vmatpush.msra.mxu0 %v1869
    %v1871 = vand.u32 %v822, 4294901760
    %1872 = vmatpush.msra.mxu0 %v1871
    %v1873 = vand.u32 %v788, 4294901760
    %1874 = vmatmul.f32.gmra.mxu0 %v1873
    %v1875 = vpop.f32.mrf.mxu0
    %v1876 = vadd.f32 %v1839, %v1875
    %1877 = vdwg.mxu0
    %v1878 = vand.u32 %v853, 4294901760
    %1879 = vmatpush.msra.mxu0 %v1878
    %v1880 = vand.u32 %v852, 4294901760
    %1881 = vmatpush.msra.mxu0 %v1880
    %v1882 = vand.u32 %v851, 4294901760
    %1883 = vmatpush.msra.mxu0 %v1882
    %v1884 = vand.u32 %v850, 4294901760
    %1885 = vmatpush.msra.mxu0 %v1884
    %v1886 = vand.u32 %v849, 4294901760
    %1887 = vmatpush.msra.mxu0 %v1886
    %v1888 = vand.u32 %v848, 4294901760
    %1889 = vmatpush.msra.mxu0 %v1888
    %v1890 = vand.u32 %v847, 4294901760
    %1891 = vmatpush.msra.mxu0 %v1890
    %v1892 = vand.u32 %v846, 4294901760
    %1893 = vmatpush.msra.mxu0 %v1892
    %v1894 = vand.u32 %v845, 4294901760
    %1895 = vmatpush.msra.mxu0 %v1894
    %v1896 = vand.u32 %v844, 4294901760
    %1897 = vmatpush.msra.mxu0 %v1896
    %v1898 = vand.u32 %v843, 4294901760
    %1899 = vmatpush.msra.mxu0 %v1898
    %v1900 = vand.u32 %v842, 4294901760
    %1901 = vmatpush.msra.mxu0 %v1900
    %v1902 = vand.u32 %v841, 4294901760
    %1903 = vmatpush.msra.mxu0 %v1902
    %v1904 = vand.u32 %v840, 4294901760
    %1905 = vmatpush.msra.mxu0 %v1904
    %v1906 = vand.u32 %v839, 4294901760
    %1907 = vmatpush.msra.mxu0 %v1906
    %v1908 = vand.u32 %v838, 4294901760
    %1909 = vmatpush.msra.mxu0 %v1908
    %v1910 = vand.u32 %v789, 4294901760
    %v1911 = vsub.f32 %v789, %v1910
    %v1912 = vand.u32 %v1911, 4294901760
    %v1913 = vsub.f32 %v1911, %v1912
    %v1914 = vand.u32 %v1913, 4294901760
    %1915 = vmatmul.f32.gmra.mxu0 %v1914
    %v1916 = vpop.f32.mrf.mxu0
    %v1917 = vadd.f32 %v1876, %v1916
    %1918 = vdwg.mxu0
    %v1919 = vand.u32 %v853, 4294901760
    %v1920 = vsub.f32 %v853, %v1919
    %v1921 = vand.u32 %v1920, 4294901760
    %v1922 = vsub.f32 %v1920, %v1921
    %v1923 = vand.u32 %v1922, 4294901760
    %1924 = vmatpush.msra.mxu0 %v1923
    %v1925 = vand.u32 %v852, 4294901760
    %v1926 = vsub.f32 %v852, %v1925
    %v1927 = vand.u32 %v1926, 4294901760
    %v1928 = vsub.f32 %v1926, %v1927
    %v1929 = vand.u32 %v1928, 4294901760
    %1930 = vmatpush.msra.mxu0 %v1929
    %v1931 = vand.u32 %v851, 4294901760
    %v1932 = vsub.f32 %v851, %v1931
    %v1933 = vand.u32 %v1932, 4294901760
    %v1934 = vsub.f32 %v1932, %v1933
    %v1935 = vand.u32 %v1934, 4294901760
    %1936 = vmatpush.msra.mxu0 %v1935
    %v1937 = vand.u32 %v850, 4294901760
    %v1938 = vsub.f32 %v850, %v1937
    %v1939 = vand.u32 %v1938, 4294901760
    %v1940 = vsub.f32 %v1938, %v1939
    %v1941 = vand.u32 %v1940, 4294901760
    %1942 = vmatpush.msra.mxu0 %v1941
    %v1943 = vand.u32 %v849, 4294901760
    %v1944 = vsub.f32 %v849, %v1943
    %v1945 = vand.u32 %v1944, 4294901760
    %v1946 = vsub.f32 %v1944, %v1945
    %v1947 = vand.u32 %v1946, 4294901760
    %1948 = vmatpush.msra.mxu0 %v1947
    %v1949 = vand.u32 %v848, 4294901760
    %v1950 = vsub.f32 %v848, %v1949
    %v1951 = vand.u32 %v1950, 4294901760
    %v1952 = vsub.f32 %v1950, %v1951
    %v1953 = vand.u32 %v1952, 4294901760
    %1954 = vmatpush.msra.mxu0 %v1953
    %v1955 = vand.u32 %v847, 4294901760
    %v1956 = vsub.f32 %v847, %v1955
    %v1957 = vand.u32 %v1956, 4294901760
    %v1958 = vsub.f32 %v1956, %v1957
    %v1959 = vand.u32 %v1958, 4294901760
    %1960 = vmatpush.msra.mxu0 %v1959
    %v1961 = vand.u32 %v846, 4294901760
    %v1962 = vsub.f32 %v846, %v1961
    %v1963 = vand.u32 %v1962, 4294901760
    %v1964 = vsub.f32 %v1962, %v1963
    %v1965 = vand.u32 %v1964, 4294901760
    %1966 = vmatpush.msra.mxu0 %v1965
    %v1967 = vand.u32 %v845, 4294901760
    %v1968 = vsub.f32 %v845, %v1967
    %v1969 = vand.u32 %v1968, 4294901760
    %v1970 = vsub.f32 %v1968, %v1969
    %v1971 = vand.u32 %v1970, 4294901760
    %1972 = vmatpush.msra.mxu0 %v1971
    %v1973 = vand.u32 %v844, 4294901760
    %v1974 = vsub.f32 %v844, %v1973
    %v1975 = vand.u32 %v1974, 4294901760
    %v1976 = vsub.f32 %v1974, %v1975
    %v1977 = vand.u32 %v1976, 4294901760
    %1978 = vmatpush.msra.mxu0 %v1977
    %v1979 = vand.u32 %v843, 4294901760
    %v1980 = vsub.f32 %v843, %v1979
    %v1981 = vand.u32 %v1980, 4294901760
    %v1982 = vsub.f32 %v1980, %v1981
    %v1983 = vand.u32 %v1982, 4294901760
    %1984 = vmatpush.msra.mxu0 %v1983
    %v1985 = vand.u32 %v842, 4294901760
    %v1986 = vsub.f32 %v842, %v1985
    %v1987 = vand.u32 %v1986, 4294901760
    %v1988 = vsub.f32 %v1986, %v1987
    %v1989 = vand.u32 %v1988, 4294901760
    %1990 = vmatpush.msra.mxu0 %v1989
    %v1991 = vand.u32 %v841, 4294901760
    %v1992 = vsub.f32 %v841, %v1991
    %v1993 = vand.u32 %v1992, 4294901760
    %v1994 = vsub.f32 %v1992, %v1993
    %v1995 = vand.u32 %v1994, 4294901760
    %1996 = vmatpush.msra.mxu0 %v1995
    %v1997 = vand.u32 %v840, 4294901760
    %v1998 = vsub.f32 %v840, %v1997
    %v1999 = vand.u32 %v1998, 4294901760
    %v2000 = vsub.f32 %v1998, %v1999
    %v2001 = vand.u32 %v2000, 4294901760
    %2002 = vmatpush.msra.mxu0 %v2001
    %v2003 = vand.u32 %v839, 4294901760
    %v2004 = vsub.f32 %v839, %v2003
    %v2005 = vand.u32 %v2004, 4294901760
    %v2006 = vsub.f32 %v2004, %v2005
    %v2007 = vand.u32 %v2006, 4294901760
    %2008 = vmatpush.msra.mxu0 %v2007
    %v2009 = vand.u32 %v838, 4294901760
    %v2010 = vsub.f32 %v838, %v2009
    %v2011 = vand.u32 %v2010, 4294901760
    %v2012 = vsub.f32 %v2010, %v2011
    %v2013 = vand.u32 %v2012, 4294901760
    %2014 = vmatpush.msra.mxu0 %v2013
    %v2015 = vand.u32 %v789, 4294901760
    %2016 = vmatmul.f32.gmra.mxu0 %v2015
    %v2017 = vpop.f32.mrf.mxu0
    %v2018 = vadd.f32 %v1917, %v2017
    %2019 = vdwg.mxu0
    %v2020 = vand.u32 %v853, 4294901760
    %v2021 = vsub.f32 %v853, %v2020
    %2022 = vmatpush.msra.mxu0 %v2021
    %v2023 = vand.u32 %v852, 4294901760
    %v2024 = vsub.f32 %v852, %v2023
    %2025 = vmatpush.msra.mxu0 %v2024
    %v2026 = vand.u32 %v851, 4294901760
    %v2027 = vsub.f32 %v851, %v2026
    %2028 = vmatpush.msra.mxu0 %v2027
    %v2029 = vand.u32 %v850, 4294901760
    %v2030 = vsub.f32 %v850, %v2029
    %2031 = vmatpush.msra.mxu0 %v2030
    %v2032 = vand.u32 %v849, 4294901760
    %v2033 = vsub.f32 %v849, %v2032
    %2034 = vmatpush.msra.mxu0 %v2033
    %v2035 = vand.u32 %v848, 4294901760
    %v2036 = vsub.f32 %v848, %v2035
    %2037 = vmatpush.msra.mxu0 %v2036
    %v2038 = vand.u32 %v847, 4294901760
    %v2039 = vsub.f32 %v847, %v2038
    %2040 = vmatpush.msra.mxu0 %v2039
    %v2041 = vand.u32 %v846, 4294901760
    %v2042 = vsub.f32 %v846, %v2041
    %2043 = vmatpush.msra.mxu0 %v2042
    %v2044 = vand.u32 %v845, 4294901760
    %v2045 = vsub.f32 %v845, %v2044
    %2046 = vmatpush.msra.mxu0 %v2045
    %v2047 = vand.u32 %v844, 4294901760
    %v2048 = vsub.f32 %v844, %v2047
    %2049 = vmatpush.msra.mxu0 %v2048
    %v2050 = vand.u32 %v843, 4294901760
    %v2051 = vsub.f32 %v843, %v2050
    %2052 = vmatpush.msra.mxu0 %v2051
    %v2053 = vand.u32 %v842, 4294901760
    %v2054 = vsub.f32 %v842, %v2053
    %2055 = vmatpush.msra.mxu0 %v2054
    %v2056 = vand.u32 %v841, 4294901760
    %v2057 = vsub.f32 %v841, %v2056
    %2058 = vmatpush.msra.mxu0 %v2057
    %v2059 = vand.u32 %v840, 4294901760
    %v2060 = vsub.f32 %v840, %v2059
    %2061 = vmatpush.msra.mxu0 %v2060
    %v2062 = vand.u32 %v839, 4294901760
    %v2063 = vsub.f32 %v839, %v2062
    %2064 = vmatpush.msra.mxu0 %v2063
    %v2065 = vand.u32 %v838, 4294901760
    %v2066 = vsub.f32 %v838, %v2065
    %2067 = vmatpush.msra.mxu0 %v2066
    %v2068 = vand.u32 %v789, 4294901760
    %v2069 = vsub.f32 %v789, %v2068
    %2070 = vmatmul.f32.gmra.mxu0 %v2069
    %v2071 = vpop.f32.mrf.mxu0
    %v2072 = vadd.f32 %v2018, %v2071
    %2073 = vdwg.mxu0
    %v2074 = vand.u32 %v853, 4294901760
    %2075 = vmatpush.msra.mxu0 %v2074
    %v2076 = vand.u32 %v852, 4294901760
    %2077 = vmatpush.msra.mxu0 %v2076
    %v2078 = vand.u32 %v851, 4294901760
    %2079 = vmatpush.msra.mxu0 %v2078
    %v2080 = vand.u32 %v850, 4294901760
    %2081 = vmatpush.msra.mxu0 %v2080
    %v2082 = vand.u32 %v849, 4294901760
    %2083 = vmatpush.msra.mxu0 %v2082
    %v2084 = vand.u32 %v848, 4294901760
    %2085 = vmatpush.msra.mxu0 %v2084
    %v2086 = vand.u32 %v847, 4294901760
    %2087 = vmatpush.msra.mxu0 %v2086
    %v2088 = vand.u32 %v846, 4294901760
    %2089 = vmatpush.msra.mxu0 %v2088
    %v2090 = vand.u32 %v845, 4294901760
    %2091 = vmatpush.msra.mxu0 %v2090
    %v2092 = vand.u32 %v844, 4294901760
    %2093 = vmatpush.msra.mxu0 %v2092
    %v2094 = vand.u32 %v843, 4294901760
    %2095 = vmatpush.msra.mxu0 %v2094
    %v2096 = vand.u32 %v842, 4294901760
    %2097 = vmatpush.msra.mxu0 %v2096
    %v2098 = vand.u32 %v841, 4294901760
    %2099 = vmatpush.msra.mxu0 %v2098
    %v2100 = vand.u32 %v840, 4294901760
    %2101 = vmatpush.msra.mxu0 %v2100
    %v2102 = vand.u32 %v839, 4294901760
    %2103 = vmatpush.msra.mxu0 %v2102
    %v2104 = vand.u32 %v838, 4294901760
    %2105 = vmatpush.msra.mxu0 %v2104
    %v2106 = vand.u32 %v789, 4294901760
    %v2107 = vsub.f32 %v789, %v2106
    %v2108 = vand.u32 %v2107, 4294901760
    %2109 = vmatmul.f32.gmra.mxu0 %v2108
    %v2110 = vpop.f32.mrf.mxu0
    %v2111 = vadd.f32 %v2072, %v2110
    %2112 = vdwg.mxu0
    %v2113 = vand.u32 %v853, 4294901760
    %v2114 = vsub.f32 %v853, %v2113
    %v2115 = vand.u32 %v2114, 4294901760
    %2116 = vmatpush.msra.mxu0 %v2115
    %v2117 = vand.u32 %v852, 4294901760
    %v2118 = vsub.f32 %v852, %v2117
    %v2119 = vand.u32 %v2118, 4294901760
    %2120 = vmatpush.msra.mxu0 %v2119
    %v2121 = vand.u32 %v851, 4294901760
    %v2122 = vsub.f32 %v851, %v2121
    %v2123 = vand.u32 %v2122, 4294901760
    %2124 = vmatpush.msra.mxu0 %v2123
    %v2125 = vand.u32 %v850, 4294901760
    %v2126 = vsub.f32 %v850, %v2125
    %v2127 = vand.u32 %v2126, 4294901760
    %2128 = vmatpush.msra.mxu0 %v2127
    %v2129 = vand.u32 %v849, 4294901760
    %v2130 = vsub.f32 %v849, %v2129
    %v2131 = vand.u32 %v2130, 4294901760
    %2132 = vmatpush.msra.mxu0 %v2131
    %v2133 = vand.u32 %v848, 4294901760
    %v2134 = vsub.f32 %v848, %v2133
    %v2135 = vand.u32 %v2134, 4294901760
    %2136 = vmatpush.msra.mxu0 %v2135
    %v2137 = vand.u32 %v847, 4294901760
    %v2138 = vsub.f32 %v847, %v2137
    %v2139 = vand.u32 %v2138, 4294901760
    %2140 = vmatpush.msra.mxu0 %v2139
    %v2141 = vand.u32 %v846, 4294901760
    %v2142 = vsub.f32 %v846, %v2141
    %v2143 = vand.u32 %v2142, 4294901760
    %2144 = vmatpush.msra.mxu0 %v2143
    %v2145 = vand.u32 %v845, 4294901760
    %v2146 = vsub.f32 %v845, %v2145
    %v2147 = vand.u32 %v2146, 4294901760
    %2148 = vmatpush.msra.mxu0 %v2147
    %v2149 = vand.u32 %v844, 4294901760
    %v2150 = vsub.f32 %v844, %v2149
    %v2151 = vand.u32 %v2150, 4294901760
    %2152 = vmatpush.msra.mxu0 %v2151
    %v2153 = vand.u32 %v843, 4294901760
    %v2154 = vsub.f32 %v843, %v2153
    %v2155 = vand.u32 %v2154, 4294901760
    %2156 = vmatpush.msra.mxu0 %v2155
    %v2157 = vand.u32 %v842, 4294901760
    %v2158 = vsub.f32 %v842, %v2157
    %v2159 = vand.u32 %v2158, 4294901760
    %2160 = vmatpush.msra.mxu0 %v2159
    %v2161 = vand.u32 %v841, 4294901760
    %v2162 = vsub.f32 %v841, %v2161
    %v2163 = vand.u32 %v2162, 4294901760
    %2164 = vmatpush.msra.mxu0 %v2163
    %v2165 = vand.u32 %v840, 4294901760
    %v2166 = vsub.f32 %v840, %v2165
    %v2167 = vand.u32 %v2166, 4294901760
    %2168 = vmatpush.msra.mxu0 %v2167
    %v2169 = vand.u32 %v839, 4294901760
    %v2170 = vsub.f32 %v839, %v2169
    %v2171 = vand.u32 %v2170, 4294901760
    %2172 = vmatpush.msra.mxu0 %v2171
    %v2173 = vand.u32 %v838, 4294901760
    %v2174 = vsub.f32 %v838, %v2173
    %v2175 = vand.u32 %v2174, 4294901760
    %2176 = vmatpush.msra.mxu0 %v2175
    %v2177 = vand.u32 %v789, 4294901760
    %2178 = vmatmul.f32.gmra.mxu0 %v2177
    %v2179 = vpop.f32.mrf.mxu0
    %v2180 = vadd.f32 %v2111, %v2179
    %2181 = vdwg.mxu0
    %v2182 = vand.u32 %v853, 4294901760
    %2183 = vmatpush.msra.mxu0 %v2182
    %v2184 = vand.u32 %v852, 4294901760
    %2185 = vmatpush.msra.mxu0 %v2184
    %v2186 = vand.u32 %v851, 4294901760
    %2187 = vmatpush.msra.mxu0 %v2186
    %v2188 = vand.u32 %v850, 4294901760
    %2189 = vmatpush.msra.mxu0 %v2188
    %v2190 = vand.u32 %v849, 4294901760
    %2191 = vmatpush.msra.mxu0 %v2190
    %v2192 = vand.u32 %v848, 4294901760
    %2193 = vmatpush.msra.mxu0 %v2192
    %v2194 = vand.u32 %v847, 4294901760
    %2195 = vmatpush.msra.mxu0 %v2194
    %v2196 = vand.u32 %v846, 4294901760
    %2197 = vmatpush.msra.mxu0 %v2196
    %v2198 = vand.u32 %v845, 4294901760
    %2199 = vmatpush.msra.mxu0 %v2198
    %v2200 = vand.u32 %v844, 4294901760
    %2201 = vmatpush.msra.mxu0 %v2200
    %v2202 = vand.u32 %v843, 4294901760
    %2203 = vmatpush.msra.mxu0 %v2202
    %v2204 = vand.u32 %v842, 4294901760
    %2205 = vmatpush.msra.mxu0 %v2204
    %v2206 = vand.u32 %v841, 4294901760
    %2207 = vmatpush.msra.mxu0 %v2206
    %v2208 = vand.u32 %v840, 4294901760
    %2209 = vmatpush.msra.mxu0 %v2208
    %v2210 = vand.u32 %v839, 4294901760
    %2211 = vmatpush.msra.mxu0 %v2210
    %v2212 = vand.u32 %v838, 4294901760
    %2213 = vmatpush.msra.mxu0 %v2212
    %v2214 = vand.u32 %v789, 4294901760
    %2215 = vmatmul.f32.gmra.mxu0 %v2214
    %v2216 = vpop.f32.mrf.mxu0
    %v2217 = vadd.f32 %v2180, %v2216
    %2218 = vdwg.mxu0
    %vm2219 = vcmask 130048
    %2220 = vst.msk [vmem:[#allocation2] sm:$0xff] %vm2219, %v2217
    // Predicated region
    $region22: #{tpu_custom_call.1} parent=1 // pred_check
      _
    $region23: #{tpu_custom_call.1} parent=1 // pred_check_branch
      %2222 = sbr.rel (0) target = $region25
    $region24: #{tpu_custom_call.1} parent=1 // pred_region
      %2224 = vsyncadd [#allocation3], 0
      %s2226 = sshll.u32 [#allocation2], 4
      %s2227 = int_to_ptr.vmem [resolvable:$true] %s2226
      %s2228 = sshll.u32 %s5, 4
      %s2229 = int_to_ptr.hbm [resolvable:$true] %s2228
      %2231 = dma.vmem_to_hbm [thread:$0]  %s2227, 128, %s2229, [#allocation3]
    $region25: #{tpu_custom_call.1} parent=1 // pred_fallthru
      _
    // Predicated region
    $region26: #{tpu_custom_call.1} parent=1 // pred_check
      _
    $region27: #{tpu_custom_call.1} parent=1 // pred_check_branch
      %2233 = sbr.rel (0) target = $region29
    $region28: #{tpu_custom_call.1} parent=1 // pred_region
      %2235 = dma.done [#allocation3], 128
    $region29: #{tpu_custom_call.1} parent=1 // pred_fallthru
      _
    %2236 = vsyncpa [#allocation3], 1

</llo_original>
